<compile_context>
chip_gen: v7x
topology: tpu7x:2x2x1
jax: 0.10.0
libtpu: 0.0.40
codegen_flags: <defaults>
</compile_context>

<pallas_src>
import math
import jax
import jax.numpy as jnp
import numpy as np
from jax.experimental import pallas as pl
from jax.experimental.pallas import tpu as pltpu

# ---------------- config (small synthetic shapes) ----------------
BZ      = 2                      # bags per batch
N_SENT  = 4                      # sentences per bag (fixed-size bags)
SEQ     = 8                      # tokens per sentence
VOCAB   = 100
WORD_D  = 16
LIMIT   = 4                      # position limit (mask threshold)
POS_D   = 4
WINDOW  = 3                      # conv window along time
OUT_C   = 16                     # settings['out_c']
N_REL   = 8                      # settings['n_rel']
IN_DIM  = WORD_D + 2 * POS_D     # 24
FEAT    = 3 * OUT_C              # feature_size = 48
K_DIM   = WINDOW * IN_DIM        # 72
PAD     = (WINDOW - 1) // 2      # 1
SEQ_PAD = SEQ + 2 * PAD          # 10

# row offsets inside the packed parameter block (3, P_ROWS, OUT_C)
_TQ0, _R0, _CB, _RB = 0, N_REL, 2 * N_REL, 2 * N_REL + 1
P_ROWS = 2 * N_REL + 2           # 18


# ---------------- fused Pallas kernel (all bags of a tile per grid step) ----------------
def pcnn_att_fused_kernel(x_ref, m_ref, w_ref, p_ref, out_ref):
    """All intermediates stay in VMEM / vregs; features are kept piece-major.

    x_ref:   (BT, N_SENT, SEQ_PAD, IN_DIM)  time-padded sentence embeddings
    m_ref:   (BT, N_SENT, SEQ, 3)           piecewise {left, mid, right} masks
    w_ref:   (WINDOW, IN_DIM, OUT_C)        conv weight, window-major blocks
    p_ref:   (3, P_ROWS, OUT_C)             packed params, per piece p:
               rows [0:N_REL]        -> tq_p  (= r_embed . att_W, piece p)
               rows [N_REL:2*N_REL]  -> r_p   (r_embed, piece p)
               row  [2*N_REL]        -> conv bias, piece p
               row  [2*N_REL+1], p=0 -> relation bias in lanes [0:N_REL]
    out_ref: (BT, N_REL)                    eval-mode prediction rows
    """
    BT = x_ref.shape[0]
    NS = x_ref.shape[1]

    # ---- PCNN conv: one fat matmul per window shift over all bags*sentences ----
    conv2 = None
    for w in range(WINDOW):                                  # static, WINDOW=3
        xw = x_ref[:, :, w:w + SEQ, :].reshape(BT * NS * SEQ, IN_DIM)
        y = jnp.dot(xw, w_ref[w], preferred_element_type=jnp.float32)
        conv2 = y if conv2 is None else conv2 + y
    conv = conv2.reshape(BT, NS, SEQ, OUT_C)                 # (BT, NS, SEQ, C)

    # ---- piecewise masked max-pooling + bias + tanh (piece-major, no concats) --
    masks = m_ref[...]                                       # (BT, NS, SEQ, 3)
    feats = []
    for p in range(3):                                       # left / mid / right
        pooled = jnp.max(conv * masks[:, :, :, p:p + 1], axis=2)   # (BT, NS, C)
        feats.append(jnp.tanh(pooled + p_ref[p, _CB:_CB + 1, :]))

    # ---- attention over sentences, batched over bags (eval *0.5 folded in) ----
    att = None
    for p in range(3):
        tq_p = jnp.broadcast_to(p_ref[p, _TQ0:_TQ0 + N_REL, :], (BT, N_REL, OUT_C))
        a = jnp.einsum('bqc,bnc->bqn', tq_p, feats[p],
                       preferred_element_type=jnp.float32)   # (BT, N_REL, NS)
        att = a if att is None else att + a
    att = att - jnp.max(att, axis=-1, keepdims=True)
    e = jnp.exp(att)
    inv = pl.reciprocal(jnp.sum(e, axis=-1, keepdims=True), approx=True)
    atten = e * (0.5 * inv)                                  # softmax * 0.5 (eval dropout)

    # ---- relation scores + log-softmax + max over query-relation rows ----------
    scores = None
    for p in range(3):
        s_p = jnp.einsum('bqn,bnc->bqc', atten, feats[p],
                         preferred_element_type=jnp.float32)        # (BT, N_REL, C)
        r_p = jnp.broadcast_to(p_ref[p, _R0:_R0 + N_REL, :], (BT, N_REL, OUT_C))
        sc = jnp.einsum('bqc,brc->bqr', s_p, r_p,
                        preferred_element_type=jnp.float32)          # (BT, N_REL, N_REL)
        scores = sc if scores is None else scores + sc
    scores = scores + p_ref[0, _RB:_RB + 1, 0:N_REL]                 # + relation bias
    mx = jnp.max(scores, axis=-1, keepdims=True)
    lse = jnp.log(jnp.sum(jnp.exp(scores - mx), axis=-1, keepdims=True)) + mx
    out_ref[...] = jnp.max(scores - lse, axis=1)                     # (BT, N_REL)


# ---------------- pallas_call wrapper ----------------
def run_fused(x_pad, masks, w3, params_packed, bags_per_step=None):
    bz = x_pad.shape[0]
    if bags_per_step is None:
        bags_per_step = bz                        # toy sizes: one fat grid step
    assert bz % bags_per_step == 0
    grid = (bz // bags_per_step,)
    return pl.pallas_call(
        pcnn_att_fused_kernel,
        out_shape=jax.ShapeDtypeStruct((bz, N_REL), jnp.float32),
        grid=grid,
        in_specs=[
            pl.BlockSpec((bags_per_step, N_SENT, SEQ_PAD, IN_DIM),
                         lambda i: (i, 0, 0, 0)),
            pl.BlockSpec((bags_per_step, N_SENT, SEQ, 3),
                         lambda i: (i, 0, 0, 0)),
            pl.BlockSpec((WINDOW, IN_DIM, OUT_C), lambda i: (0, 0, 0)),
            pl.BlockSpec((3, P_ROWS, OUT_C), lambda i: (0, 0, 0)),
        ],
        out_specs=pl.BlockSpec((bags_per_step, N_REL), lambda i: (i, 0)),
        compiler_params=pltpu.CompilerParams(dimension_semantics=("parallel",)),
    )(x_pad, masks, w3, params_packed)


# ---------------- JAX glue (embedding lookup, padding, masks, param packing) ----------------
def build_inputs(tokens, w2v, pos1_emb, pos2_emb):
    """tokens:(BZ,N_SENT,SEQ,3) -> x_pad:(BZ,N_SENT,SEQ_PAD,IN_DIM), masks:(BZ,N_SENT,SEQ,3)."""
    word_ids = tokens[..., 0]
    p1 = tokens[..., 1]
    p2 = tokens[..., 2]
    x = jnp.concatenate([jnp.take(w2v, word_ids, axis=0),
                         jnp.take(pos1_emb, p1, axis=0),
                         jnp.take(pos2_emb, p2, axis=0)], axis=-1)    # (BZ,N_SENT,SEQ,IN_DIM)
    x_pad = jnp.pad(x, ((0, 0), (0, 0), (PAD, PAD), (0, 0))).astype(jnp.float32)
    # piecewise masks (left / mid / right) from position indices vs LIMIT
    p1m = (p1 >= LIMIT).astype(jnp.float32)
    p2m = (p2 >= LIMIT).astype(jnp.float32)
    left = p1m * p2m
    right = (1.0 - p1m) * (1.0 - p2m)
    mid = 1.0 - left - right
    masks = jnp.stack([left, mid, right], axis=-1)                    # (BZ,N_SENT,SEQ,3)
    return x_pad, masks


def pack_params(params):
    """Hoist the parameter-only contraction and pack piece-major params into one block."""
    w3 = params['conv_w'].reshape(WINDOW, IN_DIM, OUT_C)              # window-major blocks
    tq = jnp.einsum('qf,qfg->qg', params['r_embed'], params['att_w'])  # (N_REL, FEAT)
    tq3 = jnp.transpose(tq.reshape(N_REL, 3, OUT_C), (1, 0, 2))       # (3, N_REL, OUT_C)
    r3 = jnp.transpose(params['r_embed'].reshape(N_REL, 3, OUT_C), (1, 0, 2))
    cb3 = params['conv_b'].reshape(3, 1, OUT_C)
    assert N_REL <= OUT_C, "relation-bias row packing assumes N_REL <= OUT_C"
    rb3 = jnp.zeros((3, 1, OUT_C), jnp.float32).at[0, 0, :N_REL].set(params['r_bias'][0])
    packed = jnp.concatenate([tq3, r3, cb3, rb3], axis=1)             # (3, P_ROWS, OUT_C)
    return w3, packed.astype(jnp.float32)


@jax.jit
def pcnn_att_forward(tokens, params):
    x_pad, masks = build_inputs(tokens, params['w2v'], params['pos1'], params['pos2'])
    w3, packed = pack_params(params)
    return run_fused(x_pad, masks, w3, packed)                        # (BZ, N_REL)


# ---------------- pure-JAX reference (same math, for validation) ----------------
def reference_forward(tokens, params):
    x_pad, masks = build_inputs(tokens, params['w2v'], params['pos1'], params['pos2'])
    w3 = params['conv_w'].reshape(WINDOW, IN_DIM, OUT_C)
    conv = sum(jnp.einsum('bnsi,ic->bnsc', x_pad[:, :, w:w + SEQ, :], w3[w])
               for w in range(WINDOW))                                # (BZ,N_SENT,SEQ,C)
    pieces = [jnp.max(conv * masks[..., p:p + 1], axis=2) + params['conv_b'][p]
              for p in range(3)]
    feats = jnp.tanh(jnp.concatenate(pieces, axis=-1))                # (BZ,N_SENT,FEAT)
    tmp = jnp.einsum('qf,qfg->qg', params['r_embed'], params['att_w'])
    att = jax.nn.softmax(jnp.einsum('qf,bnf->bqn', tmp, feats), axis=-1)
    s = jnp.einsum('bqn,bnf->bqf', att, feats) * 0.5                  # eval-mode scale
    scores = jnp.einsum('bqf,rf->bqr', s, params['r_embed']) + params['r_bias'][0]
    return jax.nn.log_softmax(scores, axis=-1).max(axis=1)


# TODO(synk): training branch (label-indexed select of s + stochastic dropout) is
# not implemented; this reproduces the eval-mode forward (incl. the "* 0.5" scale).

if __name__ == "__main__":
    key = jax.random.PRNGKey(0)
    keys = jax.random.split(key, 11)
    con = math.sqrt(6.0 / (FEAT + N_REL))
    att_w = (jnp.tile(jnp.eye(FEAT, dtype=jnp.float32)[None], (N_REL, 1, 1))
             + 0.05 * jax.random.uniform(keys[9], (N_REL, FEAT, FEAT), jnp.float32, -1.0, 1.0))
    params = {
        'r_embed': jax.random.uniform(keys[0], (N_REL, FEAT), jnp.float32, -con, con),
        'r_bias':  jax.random.uniform(keys[1], (1, N_REL), jnp.float32, -con, con),
        'att_w':   att_w,
        'conv_w':  jax.random.uniform(keys[2], (K_DIM, OUT_C), jnp.float32, -0.1, 0.1),
        'conv_b':  jax.random.uniform(keys[3], (3, 1, OUT_C), jnp.float32, -0.1, 0.1),
        'w2v':     0.1 * jax.random.normal(keys[4], (VOCAB, WORD_D), jnp.float32),
        'pos1':    0.1 * jax.random.normal(keys[5], (2 * LIMIT + 1, POS_D), jnp.float32),
        'pos2':    0.1 * jax.random.normal(keys[6], (2 * LIMIT + 1, POS_D), jnp.float32),
    }
    word_ids = jax.random.randint(keys[7], (BZ, N_SENT, SEQ, 1), 0, VOCAB)
    pos_ids = jax.random.randint(keys[8], (BZ, N_SENT, SEQ, 2), 0, 2 * LIMIT + 1)
    tokens = jnp.concatenate([word_ids, pos_ids], axis=-1).astype(jnp.int32)

    pred = jax.block_until_ready(pcnn_att_forward(tokens, params))
    assert pred.shape == (BZ, N_REL)
    assert bool(jnp.all(jnp.isfinite(pred)))

    ref = reference_forward(tokens, params)
    np.testing.assert_allclose(np.asarray(pred), np.asarray(ref), rtol=1e-2, atol=1e-2)
    print("KERNEL_OK")
</pallas_src>

<mosaic_0001>
module attributes {stable_mosaic.version = 11 : i64} {
  func.func @pcnn_att_fused_kernel(%arg0: i32, %arg1: memref<2x4x10x24xf32, #tpu.memory_space<vmem>>, %arg2: memref<2x4x8x3xf32, #tpu.memory_space<vmem>>, %arg3: memref<3x24x16xf32, #tpu.memory_space<vmem>>, %arg4: memref<3x18x16xf32, #tpu.memory_space<vmem>>, %arg5: memref<2x8xf32, #tpu.memory_space<vmem>>) attributes {dimension_semantics = [#tpu.dimension_semantics<parallel>], iteration_bounds = array<i64: 1>, scalar_prefetch = 0 : i64, scratch_operands = 0 : i64, tpu.core_type = #tpu.core_type<tc>, window_params = [{transform_indices = @transform_0, window_bounds = array<i64: 2, 4, 10, 24>}, {transform_indices = @transform_1, window_bounds = array<i64: 2, 4, 8, 3>}, {pipeline_mode = #tpu.pipeline_mode<synchronous>, transform_indices = @transform_2, window_bounds = array<i64: 3, 24, 16>}, {pipeline_mode = #tpu.pipeline_mode<synchronous>, transform_indices = @transform_3, window_bounds = array<i64: 3, 18, 16>}, {transform_indices = @transform_4, window_bounds = array<i64: 2, 8>}]} {
    %c0 = arith.constant 0 : index
    %c0_0 = arith.constant 0 : index
    %c0_1 = arith.constant 0 : index
    %c0_2 = arith.constant 0 : index
    %0 = vector.load %arg1[%c0, %c0_0, %c0_1, %c0_2] : memref<2x4x10x24xf32, #tpu.memory_space<vmem>>, vector<2x4x8x24xf32>
    %1 = vector.shape_cast %0 : vector<2x4x8x24xf32> to vector<64x24xf32>
    %c0_3 = arith.constant 0 : index
    %c0_4 = arith.constant 0 : index
    %c0_5 = arith.constant 0 : index
    %2 = vector.load %arg3[%c0_3, %c0_4, %c0_5] : memref<3x24x16xf32, #tpu.memory_space<vmem>>, vector<1x24x16xf32>
    %3 = vector.shape_cast %2 : vector<1x24x16xf32> to vector<24x16xf32>
    %cst = arith.constant dense<0.000000e+00> : vector<64x16xf32>
    %4 = tpu.matmul %1, %3, %cst {dimension_numbers = #tpu.dot_dimension_numbers<[1], [0], [0], [1], [0, 0, 1, 1], [], []>} : vector<64x24xf32>, vector<24x16xf32>, vector<64x16xf32> -> vector<64x16xf32>
    %c0_6 = arith.constant 0 : index
    %c0_7 = arith.constant 0 : index
    %c1 = arith.constant 1 : index
    %c0_8 = arith.constant 0 : index
    %5 = vector.load %arg1[%c0_6, %c0_7, %c1, %c0_8] : memref<2x4x10x24xf32, #tpu.memory_space<vmem>>, vector<2x4x8x24xf32>
    %6 = vector.shape_cast %5 : vector<2x4x8x24xf32> to vector<64x24xf32>
    %c1_9 = arith.constant 1 : index
    %c0_10 = arith.constant 0 : index
    %c0_11 = arith.constant 0 : index
    %7 = vector.load %arg3[%c1_9, %c0_10, %c0_11] : memref<3x24x16xf32, #tpu.memory_space<vmem>>, vector<1x24x16xf32>
    %8 = vector.shape_cast %7 : vector<1x24x16xf32> to vector<24x16xf32>
    %cst_12 = arith.constant dense<0.000000e+00> : vector<64x16xf32>
    %9 = tpu.matmul %6, %8, %cst_12 {dimension_numbers = #tpu.dot_dimension_numbers<[1], [0], [0], [1], [0, 0, 1, 1], [], []>} : vector<64x24xf32>, vector<24x16xf32>, vector<64x16xf32> -> vector<64x16xf32>
    %10 = arith.addf %4, %9 : vector<64x16xf32>
    %c0_13 = arith.constant 0 : index
    %c0_14 = arith.constant 0 : index
    %c2 = arith.constant 2 : index
    %c0_15 = arith.constant 0 : index
    %11 = vector.load %arg1[%c0_13, %c0_14, %c2, %c0_15] : memref<2x4x10x24xf32, #tpu.memory_space<vmem>>, vector<2x4x8x24xf32>
    %12 = vector.shape_cast %11 : vector<2x4x8x24xf32> to vector<64x24xf32>
    %c2_16 = arith.constant 2 : index
    %c0_17 = arith.constant 0 : index
    %c0_18 = arith.constant 0 : index
    %13 = vector.load %arg3[%c2_16, %c0_17, %c0_18] : memref<3x24x16xf32, #tpu.memory_space<vmem>>, vector<1x24x16xf32>
    %14 = vector.shape_cast %13 : vector<1x24x16xf32> to vector<24x16xf32>
    %cst_19 = arith.constant dense<0.000000e+00> : vector<64x16xf32>
    %15 = tpu.matmul %12, %14, %cst_19 {dimension_numbers = #tpu.dot_dimension_numbers<[1], [0], [0], [1], [0, 0, 1, 1], [], []>} : vector<64x24xf32>, vector<24x16xf32>, vector<64x16xf32> -> vector<64x16xf32>
    %16 = arith.addf %10, %15 : vector<64x16xf32>
    %17 = vector.shape_cast %16 : vector<64x16xf32> to vector<2x4x8x16xf32>
    %c0_20 = arith.constant 0 : index
    %c0_21 = arith.constant 0 : index
    %c0_22 = arith.constant 0 : index
    %c0_23 = arith.constant 0 : index
    %18 = vector.load %arg2[%c0_20, %c0_21, %c0_22, %c0_23] : memref<2x4x8x3xf32, #tpu.memory_space<vmem>>, vector<2x4x8x3xf32>
    %19 = vector.extract_strided_slice %18 {offsets = [0, 0, 0, 0], sizes = [2, 4, 8, 1], strides = [1, 1, 1, 1]} : vector<2x4x8x3xf32> to vector<2x4x8x1xf32>
    %20 = vector.broadcast %19 : vector<2x4x8x1xf32> to vector<2x4x8x16xf32>
    %21 = arith.mulf %17, %20 : vector<2x4x8x16xf32>
    %cst_24 = arith.constant dense<0xFF800000> : vector<2x4x16xf32>
    %22 = vector.multi_reduction <maximumf>, %21, %cst_24 [2] : vector<2x4x8x16xf32> to vector<2x4x16xf32>
    %c0_25 = arith.constant 0 : index
    %c16 = arith.constant 16 : index
    %c0_26 = arith.constant 0 : index
    %23 = vector.load %arg4[%c0_25, %c16, %c0_26] : memref<3x18x16xf32, #tpu.memory_space<vmem>>, vector<1x1x16xf32>
    %24 = vector.shape_cast %23 : vector<1x1x16xf32> to vector<1x16xf32>
    %25 = vector.shape_cast %24 : vector<1x16xf32> to vector<1x1x16xf32>
    %26 = vector.broadcast %25 : vector<1x1x16xf32> to vector<2x4x16xf32>
    %27 = arith.addf %22, %26 : vector<2x4x16xf32>
    %28 = math.tanh %27 : vector<2x4x16xf32>
    %29 = vector.extract_strided_slice %18 {offsets = [0, 0, 0, 1], sizes = [2, 4, 8, 1], strides = [1, 1, 1, 1]} : vector<2x4x8x3xf32> to vector<2x4x8x1xf32>
    %30 = vector.broadcast %29 : vector<2x4x8x1xf32> to vector<2x4x8x16xf32>
    %31 = arith.mulf %17, %30 : vector<2x4x8x16xf32>
    %cst_27 = arith.constant dense<0xFF800000> : vector<2x4x16xf32>
    %32 = vector.multi_reduction <maximumf>, %31, %cst_27 [2] : vector<2x4x8x16xf32> to vector<2x4x16xf32>
    %c1_28 = arith.constant 1 : index
    %c16_29 = arith.constant 16 : index
    %c0_30 = arith.constant 0 : index
    %33 = vector.load %arg4[%c1_28, %c16_29, %c0_30] : memref<3x18x16xf32, #tpu.memory_space<vmem>>, vector<1x1x16xf32>
    %34 = vector.shape_cast %33 : vector<1x1x16xf32> to vector<1x16xf32>
    %35 = vector.shape_cast %34 : vector<1x16xf32> to vector<1x1x16xf32>
    %36 = vector.broadcast %35 : vector<1x1x16xf32> to vector<2x4x16xf32>
    %37 = arith.addf %32, %36 : vector<2x4x16xf32>
    %38 = math.tanh %37 : vector<2x4x16xf32>
    %39 = vector.extract_strided_slice %18 {offsets = [0, 0, 0, 2], sizes = [2, 4, 8, 1], strides = [1, 1, 1, 1]} : vector<2x4x8x3xf32> to vector<2x4x8x1xf32>
    %40 = vector.broadcast %39 : vector<2x4x8x1xf32> to vector<2x4x8x16xf32>
    %41 = arith.mulf %17, %40 : vector<2x4x8x16xf32>
    %cst_31 = arith.constant dense<0xFF800000> : vector<2x4x16xf32>
    %42 = vector.multi_reduction <maximumf>, %41, %cst_31 [2] : vector<2x4x8x16xf32> to vector<2x4x16xf32>
    %c2_32 = arith.constant 2 : index
    %c16_33 = arith.constant 16 : index
    %c0_34 = arith.constant 0 : index
    %43 = vector.load %arg4[%c2_32, %c16_33, %c0_34] : memref<3x18x16xf32, #tpu.memory_space<vmem>>, vector<1x1x16xf32>
    %44 = vector.shape_cast %43 : vector<1x1x16xf32> to vector<1x16xf32>
    %45 = vector.shape_cast %44 : vector<1x16xf32> to vector<1x1x16xf32>
    %46 = vector.broadcast %45 : vector<1x1x16xf32> to vector<2x4x16xf32>
    %47 = arith.addf %42, %46 : vector<2x4x16xf32>
    %48 = math.tanh %47 : vector<2x4x16xf32>
    %c0_35 = arith.constant 0 : index
    %c0_36 = arith.constant 0 : index
    %c0_37 = arith.constant 0 : index
    %49 = vector.load %arg4[%c0_35, %c0_36, %c0_37] : memref<3x18x16xf32, #tpu.memory_space<vmem>>, vector<1x8x16xf32>
    %50 = vector.shape_cast %49 : vector<1x8x16xf32> to vector<8x16xf32>
    %51 = vector.shape_cast %50 : vector<8x16xf32> to vector<1x8x16xf32>
    %52 = vector.broadcast %51 : vector<1x8x16xf32> to vector<2x8x16xf32>
    "tpu.trace_start"() <{level = 10 : i32, message = "bqc,bnc->bqn"}> : () -> ()
    %cst_38 = arith.constant dense<0.000000e+00> : vector<2x8x4xf32>
    %53 = tpu.matmul %52, %28, %cst_38 {dimension_numbers = #tpu.dot_dimension_numbers<[2], [2], [1], [1], [0, 0, 0, 1, 1, 1], [0], [0]>} : vector<2x8x16xf32>, vector<2x4x16xf32>, vector<2x8x4xf32> -> vector<2x8x4xf32>
    "tpu.trace_stop"() : () -> ()
    %c1_39 = arith.constant 1 : index
    %c0_40 = arith.constant 0 : index
    %c0_41 = arith.constant 0 : index
    %54 = vector.load %arg4[%c1_39, %c0_40, %c0_41] : memref<3x18x16xf32, #tpu.memory_space<vmem>>, vector<1x8x16xf32>
    %55 = vector.shape_cast %54 : vector<1x8x16xf32> to vector<8x16xf32>
    %56 = vector.shape_cast %55 : vector<8x16xf32> to vector<1x8x16xf32>
    %57 = vector.broadcast %56 : vector<1x8x16xf32> to vector<2x8x16xf32>
    "tpu.trace_start"() <{level = 10 : i32, message = "bqc,bnc->bqn"}> : () -> ()
    %cst_42 = arith.constant dense<0.000000e+00> : vector<2x8x4xf32>
    %58 = tpu.matmul %57, %38, %cst_42 {dimension_numbers = #tpu.dot_dimension_numbers<[2], [2], [1], [1], [0, 0, 0, 1, 1, 1], [0], [0]>} : vector<2x8x16xf32>, vector<2x4x16xf32>, vector<2x8x4xf32> -> vector<2x8x4xf32>
    "tpu.trace_stop"() : () -> ()
    %59 = arith.addf %53, %58 : vector<2x8x4xf32>
    %c2_43 = arith.constant 2 : index
    %c0_44 = arith.constant 0 : index
    %c0_45 = arith.constant 0 : index
    %60 = vector.load %arg4[%c2_43, %c0_44, %c0_45] : memref<3x18x16xf32, #tpu.memory_space<vmem>>, vector<1x8x16xf32>
    %61 = vector.shape_cast %60 : vector<1x8x16xf32> to vector<8x16xf32>
    %62 = vector.shape_cast %61 : vector<8x16xf32> to vector<1x8x16xf32>
    %63 = vector.broadcast %62 : vector<1x8x16xf32> to vector<2x8x16xf32>
    "tpu.trace_start"() <{level = 10 : i32, message = "bqc,bnc->bqn"}> : () -> ()
    %cst_46 = arith.constant dense<0.000000e+00> : vector<2x8x4xf32>
    %64 = tpu.matmul %63, %48, %cst_46 {dimension_numbers = #tpu.dot_dimension_numbers<[2], [2], [1], [1], [0, 0, 0, 1, 1, 1], [0], [0]>} : vector<2x8x16xf32>, vector<2x4x16xf32>, vector<2x8x4xf32> -> vector<2x8x4xf32>
    "tpu.trace_stop"() : () -> ()
    %65 = arith.addf %59, %64 : vector<2x8x4xf32>
    %cst_47 = arith.constant dense<0xFF800000> : vector<2x8xf32>
    %66 = vector.multi_reduction <maximumf>, %65, %cst_47 [2] : vector<2x8x4xf32> to vector<2x8xf32>
    %67 = vector.shape_cast %66 : vector<2x8xf32> to vector<2x8x1xf32>
    %68 = vector.broadcast %67 : vector<2x8x1xf32> to vector<2x8x4xf32>
    %69 = arith.subf %65, %68 : vector<2x8x4xf32>
    %70 = math.exp %69 : vector<2x8x4xf32>
    %cst_48 = arith.constant dense<0.000000e+00> : vector<2x8xf32>
    %71 = vector.multi_reduction <add>, %70, %cst_48 [2] : vector<2x8x4xf32> to vector<2x8xf32>
    %72 = vector.shape_cast %71 : vector<2x8xf32> to vector<2x8x1xf32>
    %73 = tpu.reciprocal %72 {approx = true} : vector<2x8x1xf32> -> vector<2x8x1xf32>
    %cst_49 = arith.constant 5.000000e-01 : f32
    %74 = vector.broadcast %cst_49 : f32 to vector<2x8x1xf32>
    %75 = arith.mulf %74, %73 : vector<2x8x1xf32>
    %76 = vector.broadcast %75 : vector<2x8x1xf32> to vector<2x8x4xf32>
    %77 = arith.mulf %70, %76 : vector<2x8x4xf32>
    "tpu.trace_start"() <{level = 10 : i32, message = "bqn,bnc->bqc"}> : () -> ()
    %cst_50 = arith.constant dense<0.000000e+00> : vector<2x8x16xf32>
    %78 = tpu.matmul %77, %28, %cst_50 {dimension_numbers = #tpu.dot_dimension_numbers<[2], [1], [1], [2], [0, 0, 0, 1, 1, 2], [0], [0]>} : vector<2x8x4xf32>, vector<2x4x16xf32>, vector<2x8x16xf32> -> vector<2x8x16xf32>
    "tpu.trace_stop"() : () -> ()
    %c0_51 = arith.constant 0 : index
    %c8 = arith.constant 8 : index
    %c0_52 = arith.constant 0 : index
    %79 = vector.load %arg4[%c0_51, %c8, %c0_52] : memref<3x18x16xf32, #tpu.memory_space<vmem>>, vector<1x8x16xf32>
    %80 = vector.shape_cast %79 : vector<1x8x16xf32> to vector<8x16xf32>
    %81 = vector.shape_cast %80 : vector<8x16xf32> to vector<1x8x16xf32>
    %82 = vector.broadcast %81 : vector<1x8x16xf32> to vector<2x8x16xf32>
    "tpu.trace_start"() <{level = 10 : i32, message = "bqc,brc->bqr"}> : () -> ()
    %cst_53 = arith.constant dense<0.000000e+00> : vector<2x8x8xf32>
    %83 = tpu.matmul %78, %82, %cst_53 {dimension_numbers = #tpu.dot_dimension_numbers<[2], [2], [1], [1], [0, 0, 0, 1, 1, 1], [0], [0]>} : vector<2x8x16xf32>, vector<2x8x16xf32>, vector<2x8x8xf32> -> vector<2x8x8xf32>
    "tpu.trace_stop"() : () -> ()
    "tpu.trace_start"() <{level = 10 : i32, message = "bqn,bnc->bqc"}> : () -> ()
    %cst_54 = arith.constant dense<0.000000e+00> : vector<2x8x16xf32>
    %84 = tpu.matmul %77, %38, %cst_54 {dimension_numbers = #tpu.dot_dimension_numbers<[2], [1], [1], [2], [0, 0, 0, 1, 1, 2], [0], [0]>} : vector<2x8x4xf32>, vector<2x4x16xf32>, vector<2x8x16xf32> -> vector<2x8x16xf32>
    "tpu.trace_stop"() : () -> ()
    %c1_55 = arith.constant 1 : index
    %c8_56 = arith.constant 8 : index
    %c0_57 = arith.constant 0 : index
    %85 = vector.load %arg4[%c1_55, %c8_56, %c0_57] : memref<3x18x16xf32, #tpu.memory_space<vmem>>, vector<1x8x16xf32>
    %86 = vector.shape_cast %85 : vector<1x8x16xf32> to vector<8x16xf32>
    %87 = vector.shape_cast %86 : vector<8x16xf32> to vector<1x8x16xf32>
    %88 = vector.broadcast %87 : vector<1x8x16xf32> to vector<2x8x16xf32>
    "tpu.trace_start"() <{level = 10 : i32, message = "bqc,brc->bqr"}> : () -> ()
    %cst_58 = arith.constant dense<0.000000e+00> : vector<2x8x8xf32>
    %89 = tpu.matmul %84, %88, %cst_58 {dimension_numbers = #tpu.dot_dimension_numbers<[2], [2], [1], [1], [0, 0, 0, 1, 1, 1], [0], [0]>} : vector<2x8x16xf32>, vector<2x8x16xf32>, vector<2x8x8xf32> -> vector<2x8x8xf32>
    "tpu.trace_stop"() : () -> ()
    %90 = arith.addf %83, %89 : vector<2x8x8xf32>
    "tpu.trace_start"() <{level = 10 : i32, message = "bqn,bnc->bqc"}> : () -> ()
    %cst_59 = arith.constant dense<0.000000e+00> : vector<2x8x16xf32>
    %91 = tpu.matmul %77, %48, %cst_59 {dimension_numbers = #tpu.dot_dimension_numbers<[2], [1], [1], [2], [0, 0, 0, 1, 1, 2], [0], [0]>} : vector<2x8x4xf32>, vector<2x4x16xf32>, vector<2x8x16xf32> -> vector<2x8x16xf32>
    "tpu.trace_stop"() : () -> ()
    %c2_60 = arith.constant 2 : index
    %c8_61 = arith.constant 8 : index
    %c0_62 = arith.constant 0 : index
    %92 = vector.load %arg4[%c2_60, %c8_61, %c0_62] : memref<3x18x16xf32, #tpu.memory_space<vmem>>, vector<1x8x16xf32>
    %93 = vector.shape_cast %92 : vector<1x8x16xf32> to vector<8x16xf32>
    %94 = vector.shape_cast %93 : vector<8x16xf32> to vector<1x8x16xf32>
    %95 = vector.broadcast %94 : vector<1x8x16xf32> to vector<2x8x16xf32>
    "tpu.trace_start"() <{level = 10 : i32, message = "bqc,brc->bqr"}> : () -> ()
    %cst_63 = arith.constant dense<0.000000e+00> : vector<2x8x8xf32>
    %96 = tpu.matmul %91, %95, %cst_63 {dimension_numbers = #tpu.dot_dimension_numbers<[2], [2], [1], [1], [0, 0, 0, 1, 1, 1], [0], [0]>} : vector<2x8x16xf32>, vector<2x8x16xf32>, vector<2x8x8xf32> -> vector<2x8x8xf32>
    "tpu.trace_stop"() : () -> ()
    %97 = arith.addf %90, %96 : vector<2x8x8xf32>
    %c0_64 = arith.constant 0 : index
    %c17 = arith.constant 17 : index
    %c0_65 = arith.constant 0 : index
    %98 = vector.load %arg4[%c0_64, %c17, %c0_65] : memref<3x18x16xf32, #tpu.memory_space<vmem>>, vector<1x1x8xf32>
    %99 = vector.shape_cast %98 : vector<1x1x8xf32> to vector<1x8xf32>
    %100 = vector.shape_cast %99 : vector<1x8xf32> to vector<1x1x8xf32>
    %101 = vector.broadcast %100 : vector<1x1x8xf32> to vector<2x8x8xf32>
    %102 = arith.addf %97, %101 : vector<2x8x8xf32>
    %cst_66 = arith.constant dense<0xFF800000> : vector<2x8xf32>
    %103 = vector.multi_reduction <maximumf>, %102, %cst_66 [2] : vector<2x8x8xf32> to vector<2x8xf32>
    %104 = vector.shape_cast %103 : vector<2x8xf32> to vector<2x8x1xf32>
    %105 = vector.broadcast %104 : vector<2x8x1xf32> to vector<2x8x8xf32>
    %106 = arith.subf %102, %105 : vector<2x8x8xf32>
    %107 = math.exp %106 : vector<2x8x8xf32>
    %cst_67 = arith.constant dense<0.000000e+00> : vector<2x8xf32>
    %108 = vector.multi_reduction <add>, %107, %cst_67 [2] : vector<2x8x8xf32> to vector<2x8xf32>
    %109 = vector.shape_cast %108 : vector<2x8xf32> to vector<2x8x1xf32>
    %110 = math.log %109 : vector<2x8x1xf32>
    %111 = arith.addf %110, %104 : vector<2x8x1xf32>
    %112 = vector.broadcast %111 : vector<2x8x1xf32> to vector<2x8x8xf32>
    %113 = arith.subf %102, %112 : vector<2x8x8xf32>
    %cst_68 = arith.constant dense<0xFF800000> : vector<2x8xf32>
    %114 = vector.multi_reduction <maximumf>, %113, %cst_68 [1] : vector<2x8x8xf32> to vector<2x8xf32>
    %c0_69 = arith.constant 0 : index
    %c0_70 = arith.constant 0 : index
    %115 = vector.load %arg5[%c0_69, %c0_70] : memref<2x8xf32, #tpu.memory_space<vmem>>, vector<2x8xf32>
    tpu.vector_store %arg5[%c0_69, %c0_70], %114 {strides = array<i32>} : memref<2x8xf32, #tpu.memory_space<vmem>>, vector<2x8xf32>,
    return
  }
  func.func @transform_0(%arg0: i32) -> (i32, i32, i32, i32) {
    %c0_i32 = arith.constant 0 : i32
    %c0_i32_0 = arith.constant 0 : i32
    %c0_i32_1 = arith.constant 0 : i32
    %c0_i32_2 = arith.constant 0 : i32
    return %arg0, %c0_i32, %c0_i32_0, %c0_i32_1 : i32, i32, i32, i32
  }
  func.func @transform_1(%arg0: i32) -> (i32, i32, i32, i32) {
    %c0_i32 = arith.constant 0 : i32
    %c0_i32_0 = arith.constant 0 : i32
    %c0_i32_1 = arith.constant 0 : i32
    %c0_i32_2 = arith.constant 0 : i32
    return %arg0, %c0_i32, %c0_i32_0, %c0_i32_1 : i32, i32, i32, i32
  }
  func.func @transform_2(%arg0: i32) -> (i32, i32, i32) {
    %c0_i32 = arith.constant 0 : i32
    %c0_i32_0 = arith.constant 0 : i32
    %c0_i32_1 = arith.constant 0 : i32
    %c0_i32_2 = arith.constant 0 : i32
    return %c0_i32, %c0_i32_0, %c0_i32_1 : i32, i32, i32
  }
  func.func @transform_3(%arg0: i32) -> (i32, i32, i32) {
    %c0_i32 = arith.constant 0 : i32
    %c0_i32_0 = arith.constant 0 : i32
    %c0_i32_1 = arith.constant 0 : i32
    %c0_i32_2 = arith.constant 0 : i32
    return %c0_i32, %c0_i32_0, %c0_i32_1 : i32, i32, i32
  }
  func.func @transform_4(%arg0: i32) -> (i32, i32) {
    %c0_i32 = arith.constant 0 : i32
    %c0_i32_0 = arith.constant 0 : i32
    return %arg0, %c0_i32 : i32, i32
  }
}

</mosaic_0001>

<llo_original>
// kernel: pcnn_att_forward.1
$region0: #{pcnn_att_forward.1}
  #allocation0 [shape = 'u32[]', space=smem, size = 0x4, offset = 0x4, fixed_abs, tag = 'smem constant byte address 0x4 - core index']
  #allocation1 [shape = 'u32[144,128]{1,0:T(1,128)}', space=vmem, size = 0x12000, scoped, tag = 'internal scratch']
  %s0 = inlined_call_operand.vmem [shape: f32[2,4,10,24], index: 0, kind: input, shape index: {}]
  %s1 = inlined_call_operand.vmem [shape: f32[2,4,8,3], index: 1, kind: input, shape index: {}]
  %s2 = inlined_call_operand.vmem [shape: f32[3,24,16], index: 2, kind: input, shape index: {}]
  %s3 = inlined_call_operand.vmem [shape: f32[3,18,16], index: 3, kind: input, shape index: {}]
  %s4 = inlined_call_operand.hbm [shape: f32[2,8], index: 4, kind: output, shape index: {}]
  %s5 = sld [smem:[#allocation0]]
  $region26: #{pcnn_att_forward.1} parent=0
    _
  %s7 = ssub.s32 1, %s5
  %s8 = scalar_select 0, %s7, %s5
  $region1: #{pcnn_att_forward.1} parent=0
    #allocation2 [shape = 'u8[1024]{0}', space=vmem, size = 0x400, scoped, tag = 'output window, operand 0, single buffered']
    #allocation3 [shape = 's32[1]{0}', space=sflag, size = 0x4, scoped, tag = 'scoped memory for pcnn_att_forward.1']
    %9 = vsyncpa [#allocation3], 0
    // Predicated region
    $region2: #{pcnn_att_forward.1} parent=1 // pred_check
      _
    $region3: #{pcnn_att_forward.1} parent=1 // pred_check_branch
      %11 = sbr.rel (0) target = $region5
    $region4: #{pcnn_att_forward.1} parent=1 // pred_region
      _
    $region5: #{pcnn_att_forward.1} parent=1 // pred_fallthru
      _
    // Predicated region
    $region6: #{pcnn_att_forward.1} parent=1 // pred_check
      _
    $region7: #{pcnn_att_forward.1} parent=1 // pred_check_branch
      %13 = sbr.rel (0) target = $region9
    $region8: #{pcnn_att_forward.1} parent=1 // pred_region
      _
    $region9: #{pcnn_att_forward.1} parent=1 // pred_fallthru
      _
    // Predicated region
    $region10: #{pcnn_att_forward.1} parent=1 // pred_check
      _
    $region11: #{pcnn_att_forward.1} parent=1 // pred_check_branch
      %15 = sbr.rel (0) target = $region13
    $region12: #{pcnn_att_forward.1} parent=1 // pred_region
      _
    $region13: #{pcnn_att_forward.1} parent=1 // pred_fallthru
      _
    // Predicated region
    $region14: #{pcnn_att_forward.1} parent=1 // pred_check
      _
    $region15: #{pcnn_att_forward.1} parent=1 // pred_check_branch
      %17 = sbr.rel (0) target = $region17
    $region16: #{pcnn_att_forward.1} parent=1 // pred_region
      _
    $region17: #{pcnn_att_forward.1} parent=1 // pred_fallthru
      _
    %v18 = vld [vmem:[%s0] sm:$0xff]
    %v19 = vld [vmem:[%s0 + $0x10] sm:$0xff]
    %v20 = vld [vmem:[%s0 + $0x20] sm:$0xff]
    %v21 = vld [vmem:[%s0 + $0x30] sm:$0xff]
    %v22 = vld [vmem:[%s0 + $0x40] sm:$0xff]
    %v23 = vld [vmem:[%s0 + $0x50] sm:$0xff]
    %v24 = vld [vmem:[%s0 + $0x60] sm:$0xff]
    %v25 = vld [vmem:[%s0 + $0x70] sm:$0xff]
    %v26 = vld [vmem:[%s2] sm:$0xff]
    %v27 = vld [vmem:[%s2 + $0x8] sm:$0xff]
    %v28 = vld [vmem:[%s2 + $0x10] sm:$0xff]
    %v29 = vld [vmem:[%s0 + $0x1] sm:$0xff]
    %v30 = vld [vmem:[%s0 + $0x11] sm:$0xff]
    %v31 = vld [vmem:[%s0 + $0x21] sm:$0xff]
    %v32 = vld [vmem:[%s0 + $0x31] sm:$0xff]
    %v33 = vld [vmem:[%s0 + $0x41] sm:$0xff]
    %v34 = vld [vmem:[%s0 + $0x51] sm:$0xff]
    %v35 = vld [vmem:[%s0 + $0x61] sm:$0xff]
    %v36 = vld [vmem:[%s0 + $0x71] sm:$0xff]
    %s37 = scalar_lea.vmem %s2, 24
    %v38 = vld [vmem:[%s37] sm:$0xff]
    %v39 = vld [vmem:[%s37 + $0x8] sm:$0xff]
    %v40 = vld [vmem:[%s37 + $0x10] sm:$0xff]
    %vm41 = vcmask 195584
    %v43 = vsel %vm41, %v29, 0
    %v46 = vsel %vm41, %v30, 0
    %v49 = vsel %vm41, %v31, 0
    %v52 = vsel %vm41, %v32, 0
    %v55 = vsel %vm41, %v33, 0
    %v58 = vsel %vm41, %v34, 0
    %v61 = vsel %vm41, %v35, 0
    %v64 = vsel %vm41, %v36, 0
    %66 = vmatprep.subr.mxu0 0.0
    %67 = vmatpush1.msra.mxu0 %v38
    %68 = vmatprep.subr.mxu0 0.0
    %69 = vmatpush1.msra.mxu0 %v39
    %70 = vmatprep.subr.mxu0 0.0
    %71 = vmatpush1.msra.mxu0 %v40
    %72 = vmatprep.subr.mxu0 0.0
    %73 = vmatpush1.msra.mxu0 0.0
    %74 = vmatprep.subr.mxu0 0.0
    %75 = vmatpush1.msra.mxu0 0.0
    %76 = vmatprep.subr.mxu0 0.0
    %77 = vmatpush1.msra.mxu0 0.0
    %78 = vmatprep.subr.mxu0 0.0
    %79 = vmatpush1.msra.mxu0 0.0
    %80 = vmatprep.subr.mxu0 0.0
    %81 = vmatpush1.msra.mxu0 0.0
    %82 = vmatprep.subr.mxu0 0.0
    %83 = vmatpush1.msra.mxu0 0.0
    %84 = vmatprep.subr.mxu0 0.0
    %85 = vmatpush1.msra.mxu0 0.0
    %86 = vmatprep.subr.mxu0 0.0
    %87 = vmatpush1.msra.mxu0 0.0
    %88 = vmatprep.subr.mxu0 0.0
    %89 = vmatpush1.msra.mxu0 0.0
    %90 = vmatprep.subr.mxu0 0.0
    %91 = vmatpush1.msra.mxu0 0.0
    %92 = vmatprep.subr.mxu0 0.0
    %93 = vmatpush1.msra.mxu0 0.0
    %94 = vmatprep.subr.mxu0 0.0
    %95 = vmatpush1.msra.mxu0 0.0
    %96 = vmatprep.subr.mxu0 0.0
    %97 = vmatpush1.msra.mxu0 0.0
    %98 = vmatprep.subr.mxu0 0.0
    %99 = vmatpush1.msra.mxu0 0.0
    %100 = vmatprep.subr.mxu0 0.0
    %101 = vmatpush1.msra.mxu0 0.0
    %102 = vmatprep.subr.mxu0 0.0
    %103 = vmatpush1.msra.mxu0 0.0
    %104 = vmatprep.subr.mxu0 0.0
    %105 = vmatpush1.msra.mxu0 0.0
    %106 = vmatprep.subr.mxu0 0.0
    %107 = vmatpush1.msra.mxu0 0.0
    %108 = vmatprep.subr.mxu0 0.0
    %109 = vmatpush1.msra.mxu0 0.0
    %110 = vmatprep.subr.mxu0 0.0
    %111 = vmatpush1.msra.mxu0 0.0
    %112 = vmatprep.subr.mxu0 0.0
    %113 = vmatpush1.msra.mxu0 0.0
    %114 = vmatprep.subr.mxu0 0.0
    %115 = vmatpush1.msra.mxu0 0.0
    %116 = vmatprep.subr.mxu0 0.0
    %117 = vmatpush1.msra.mxu0 0.0
    %118 = vmatprep.subr.mxu0 0.0
    %119 = vmatpush1.msra.mxu0 0.0
    %120 = vmatprep.subr.mxu0 0.0
    %121 = vmatpush1.msra.mxu0 0.0
    %122 = vmatprep.subr.mxu0 0.0
    %123 = vmatpush1.msra.mxu0 0.0
    %124 = vmatprep.subr.mxu0 0.0
    %125 = vmatpush1.msra.mxu0 0.0
    %126 = vmatprep.subr.mxu0 0.0
    %127 = vmatpush1.msra.mxu0 0.0
    %128 = vmatprep.subr.mxu0 0.0
    %129 = vmatpush1.msra.mxu0 0.0
    %130 = vmatprep.mubr.f32.mxu0 0.0
    %131 = vmatmul.mubr.f32.gmra.mrb[0].mxu0 %v43
    %v132 = vpop.f32.mrb[0].mxu0
    %v133 = vadd.f32 0.0, %v132
    %v134 = vpop.f32.mrb[0].mxu0
    %135 = vmatprep.mubr.f32.mxu0 0.0
    %136 = vmatmul.mubr.f32.gmra.mrb[0].mxu0 %v46
    %v137 = vpop.f32.mrb[0].mxu0
    %v138 = vadd.f32 0.0, %v137
    %v139 = vpop.f32.mrb[0].mxu0
    %140 = vmatprep.mubr.f32.mxu0 0.0
    %141 = vmatmul.mubr.f32.gmra.mrb[0].mxu0 %v49
    %v142 = vpop.f32.mrb[0].mxu0
    %v143 = vadd.f32 0.0, %v142
    %v144 = vpop.f32.mrb[0].mxu0
    %145 = vmatprep.mubr.f32.mxu0 0.0
    %146 = vmatmul.mubr.f32.gmra.mrb[0].mxu0 %v52
    %v147 = vpop.f32.mrb[0].mxu0
    %v148 = vadd.f32 0.0, %v147
    %v149 = vpop.f32.mrb[0].mxu0
    %150 = vmatprep.mubr.f32.mxu0 0.0
    %151 = vmatmul.mubr.f32.gmra.mrb[0].mxu0 %v55
    %v152 = vpop.f32.mrb[0].mxu0
    %v153 = vadd.f32 0.0, %v152
    %v154 = vpop.f32.mrb[0].mxu0
    %155 = vmatprep.mubr.f32.mxu0 0.0
    %156 = vmatmul.mubr.f32.gmra.mrb[0].mxu0 %v58
    %v157 = vpop.f32.mrb[0].mxu0
    %v158 = vadd.f32 0.0, %v157
    %v159 = vpop.f32.mrb[0].mxu0
    %160 = vmatprep.mubr.f32.mxu0 0.0
    %161 = vmatmul.mubr.f32.gmra.mrb[0].mxu0 %v61
    %v162 = vpop.f32.mrb[0].mxu0
    %v163 = vadd.f32 0.0, %v162
    %v164 = vpop.f32.mrb[0].mxu0
    %165 = vmatprep.mubr.f32.mxu0 0.0
    %166 = vmatmul.mubr.f32.gmra.mrb[0].mxu0 %v64
    %v167 = vpop.f32.mrb[0].mxu0
    %v168 = vadd.f32 0.0, %v167
    %v169 = vpop.f32.mrb[0].mxu0
    %170 = vdwg.mxu0
    %v172 = vsel %vm41, %v18, 0
    %v175 = vsel %vm41, %v19, 0
    %v178 = vsel %vm41, %v20, 0
    %v181 = vsel %vm41, %v21, 0
    %v184 = vsel %vm41, %v22, 0
    %v187 = vsel %vm41, %v23, 0
    %v190 = vsel %vm41, %v24, 0
    %v193 = vsel %vm41, %v25, 0
    %195 = vmatprep.subr.mxu0 0.0
    %196 = vmatpush1.msra.mxu0 %v26
    %197 = vmatprep.subr.mxu0 0.0
    %198 = vmatpush1.msra.mxu0 %v27
    %199 = vmatprep.subr.mxu0 0.0
    %200 = vmatpush1.msra.mxu0 %v28
    %201 = vmatprep.subr.mxu0 0.0
    %202 = vmatpush1.msra.mxu0 0.0
    %203 = vmatprep.subr.mxu0 0.0
    %204 = vmatpush1.msra.mxu0 0.0
    %205 = vmatprep.subr.mxu0 0.0
    %206 = vmatpush1.msra.mxu0 0.0
    %207 = vmatprep.subr.mxu0 0.0
    %208 = vmatpush1.msra.mxu0 0.0
    %209 = vmatprep.subr.mxu0 0.0
    %210 = vmatpush1.msra.mxu0 0.0
    %211 = vmatprep.subr.mxu0 0.0
    %212 = vmatpush1.msra.mxu0 0.0
    %213 = vmatprep.subr.mxu0 0.0
    %214 = vmatpush1.msra.mxu0 0.0
    %215 = vmatprep.subr.mxu0 0.0
    %216 = vmatpush1.msra.mxu0 0.0
    %217 = vmatprep.subr.mxu0 0.0
    %218 = vmatpush1.msra.mxu0 0.0
    %219 = vmatprep.subr.mxu0 0.0
    %220 = vmatpush1.msra.mxu0 0.0
    %221 = vmatprep.subr.mxu0 0.0
    %222 = vmatpush1.msra.mxu0 0.0
    %223 = vmatprep.subr.mxu0 0.0
    %224 = vmatpush1.msra.mxu0 0.0
    %225 = vmatprep.subr.mxu0 0.0
    %226 = vmatpush1.msra.mxu0 0.0
    %227 = vmatprep.subr.mxu0 0.0
    %228 = vmatpush1.msra.mxu0 0.0
    %229 = vmatprep.subr.mxu0 0.0
    %230 = vmatpush1.msra.mxu0 0.0
    %231 = vmatprep.subr.mxu0 0.0
    %232 = vmatpush1.msra.mxu0 0.0
    %233 = vmatprep.subr.mxu0 0.0
    %234 = vmatpush1.msra.mxu0 0.0
    %235 = vmatprep.subr.mxu0 0.0
    %236 = vmatpush1.msra.mxu0 0.0
    %237 = vmatprep.subr.mxu0 0.0
    %238 = vmatpush1.msra.mxu0 0.0
    %239 = vmatprep.subr.mxu0 0.0
    %240 = vmatpush1.msra.mxu0 0.0
    %241 = vmatprep.subr.mxu0 0.0
    %242 = vmatpush1.msra.mxu0 0.0
    %243 = vmatprep.subr.mxu0 0.0
    %244 = vmatpush1.msra.mxu0 0.0
    %245 = vmatprep.subr.mxu0 0.0
    %246 = vmatpush1.msra.mxu0 0.0
    %247 = vmatprep.subr.mxu0 0.0
    %248 = vmatpush1.msra.mxu0 0.0
    %249 = vmatprep.subr.mxu0 0.0
    %250 = vmatpush1.msra.mxu0 0.0
    %251 = vmatprep.subr.mxu0 0.0
    %252 = vmatpush1.msra.mxu0 0.0
    %253 = vmatprep.subr.mxu0 0.0
    %254 = vmatpush1.msra.mxu0 0.0
    %255 = vmatprep.subr.mxu0 0.0
    %256 = vmatpush1.msra.mxu0 0.0
    %257 = vmatprep.subr.mxu0 0.0
    %258 = vmatpush1.msra.mxu0 0.0
    %259 = vmatprep.mubr.f32.mxu0 0.0
    %260 = vmatmul.mubr.f32.gmra.mrb[0].mxu0 %v172
    %v261 = vpop.f32.mrb[0].mxu0
    %v262 = vadd.f32 %v133, %v261
    %v263 = vpop.f32.mrb[0].mxu0
    %264 = vmatprep.mubr.f32.mxu0 0.0
    %265 = vmatmul.mubr.f32.gmra.mrb[0].mxu0 %v175
    %v266 = vpop.f32.mrb[0].mxu0
    %v267 = vadd.f32 %v138, %v266
    %v268 = vpop.f32.mrb[0].mxu0
    %269 = vmatprep.mubr.f32.mxu0 0.0
    %270 = vmatmul.mubr.f32.gmra.mrb[0].mxu0 %v178
    %v271 = vpop.f32.mrb[0].mxu0
    %v272 = vadd.f32 %v143, %v271
    %v273 = vpop.f32.mrb[0].mxu0
    %274 = vmatprep.mubr.f32.mxu0 0.0
    %275 = vmatmul.mubr.f32.gmra.mrb[0].mxu0 %v181
    %v276 = vpop.f32.mrb[0].mxu0
    %v277 = vadd.f32 %v148, %v276
    %v278 = vpop.f32.mrb[0].mxu0
    %279 = vmatprep.mubr.f32.mxu0 0.0
    %280 = vmatmul.mubr.f32.gmra.mrb[0].mxu0 %v184
    %v281 = vpop.f32.mrb[0].mxu0
    %v282 = vadd.f32 %v153, %v281
    %v283 = vpop.f32.mrb[0].mxu0
    %284 = vmatprep.mubr.f32.mxu0 0.0
    %285 = vmatmul.mubr.f32.gmra.mrb[0].mxu0 %v187
    %v286 = vpop.f32.mrb[0].mxu0
    %v287 = vadd.f32 %v158, %v286
    %v288 = vpop.f32.mrb[0].mxu0
    %289 = vmatprep.mubr.f32.mxu0 0.0
    %290 = vmatmul.mubr.f32.gmra.mrb[0].mxu0 %v190
    %v291 = vpop.f32.mrb[0].mxu0
    %v292 = vadd.f32 %v163, %v291
    %v293 = vpop.f32.mrb[0].mxu0
    %294 = vmatprep.mubr.f32.mxu0 0.0
    %295 = vmatmul.mubr.f32.gmra.mrb[0].mxu0 %v193
    %v296 = vpop.f32.mrb[0].mxu0
    %v297 = vadd.f32 %v168, %v296
    %v298 = vpop.f32.mrb[0].mxu0
    %299 = vdwg.mxu0
    %v300 = vld [vmem:[%s0 + $0x2] sm:$0xff]
    %v301 = vld [vmem:[%s0 + $0x12] sm:$0xff]
    %v302 = vld [vmem:[%s0 + $0x22] sm:$0xff]
    %v303 = vld [vmem:[%s0 + $0x32] sm:$0xff]
    %v304 = vld [vmem:[%s0 + $0x42] sm:$0xff]
    %v305 = vld [vmem:[%s0 + $0x52] sm:$0xff]
    %v306 = vld [vmem:[%s0 + $0x62] sm:$0xff]
    %v307 = vld [vmem:[%s0 + $0x72] sm:$0xff]
    %s308 = scalar_lea.vmem %s2, 48
    %v309 = vld [vmem:[%s308] sm:$0xff]
    %v310 = vld [vmem:[%s308 + $0x8] sm:$0xff]
    %v311 = vld [vmem:[%s308 + $0x10] sm:$0xff]
    %v313 = vsel %vm41, %v300, 0
    %v316 = vsel %vm41, %v301, 0
    %v319 = vsel %vm41, %v302, 0
    %v322 = vsel %vm41, %v303, 0
    %v325 = vsel %vm41, %v304, 0
    %v328 = vsel %vm41, %v305, 0
    %v331 = vsel %vm41, %v306, 0
    %v334 = vsel %vm41, %v307, 0
    %336 = vmatprep.subr.mxu0 0.0
    %337 = vmatpush1.msra.mxu0 %v309
    %338 = vmatprep.subr.mxu0 0.0
    %339 = vmatpush1.msra.mxu0 %v310
    %340 = vmatprep.subr.mxu0 0.0
    %341 = vmatpush1.msra.mxu0 %v311
    %342 = vmatprep.subr.mxu0 0.0
    %343 = vmatpush1.msra.mxu0 0.0
    %344 = vmatprep.subr.mxu0 0.0
    %345 = vmatpush1.msra.mxu0 0.0
    %346 = vmatprep.subr.mxu0 0.0
    %347 = vmatpush1.msra.mxu0 0.0
    %348 = vmatprep.subr.mxu0 0.0
    %349 = vmatpush1.msra.mxu0 0.0
    %350 = vmatprep.subr.mxu0 0.0
    %351 = vmatpush1.msra.mxu0 0.0
    %352 = vmatprep.subr.mxu0 0.0
    %353 = vmatpush1.msra.mxu0 0.0
    %354 = vmatprep.subr.mxu0 0.0
    %355 = vmatpush1.msra.mxu0 0.0
    %356 = vmatprep.subr.mxu0 0.0
    %357 = vmatpush1.msra.mxu0 0.0
    %358 = vmatprep.subr.mxu0 0.0
    %359 = vmatpush1.msra.mxu0 0.0
    %360 = vmatprep.subr.mxu0 0.0
    %361 = vmatpush1.msra.mxu0 0.0
    %362 = vmatprep.subr.mxu0 0.0
    %363 = vmatpush1.msra.mxu0 0.0
    %364 = vmatprep.subr.mxu0 0.0
    %365 = vmatpush1.msra.mxu0 0.0
    %366 = vmatprep.subr.mxu0 0.0
    %367 = vmatpush1.msra.mxu0 0.0
    %368 = vmatprep.subr.mxu0 0.0
    %369 = vmatpush1.msra.mxu0 0.0
    %370 = vmatprep.subr.mxu0 0.0
    %371 = vmatpush1.msra.mxu0 0.0
    %372 = vmatprep.subr.mxu0 0.0
    %373 = vmatpush1.msra.mxu0 0.0
    %374 = vmatprep.subr.mxu0 0.0
    %375 = vmatpush1.msra.mxu0 0.0
    %376 = vmatprep.subr.mxu0 0.0
    %377 = vmatpush1.msra.mxu0 0.0
    %378 = vmatprep.subr.mxu0 0.0
    %379 = vmatpush1.msra.mxu0 0.0
    %380 = vmatprep.subr.mxu0 0.0
    %381 = vmatpush1.msra.mxu0 0.0
    %382 = vmatprep.subr.mxu0 0.0
    %383 = vmatpush1.msra.mxu0 0.0
    %384 = vmatprep.subr.mxu0 0.0
    %385 = vmatpush1.msra.mxu0 0.0
    %386 = vmatprep.subr.mxu0 0.0
    %387 = vmatpush1.msra.mxu0 0.0
    %388 = vmatprep.subr.mxu0 0.0
    %389 = vmatpush1.msra.mxu0 0.0
    %390 = vmatprep.subr.mxu0 0.0
    %391 = vmatpush1.msra.mxu0 0.0
    %392 = vmatprep.subr.mxu0 0.0
    %393 = vmatpush1.msra.mxu0 0.0
    %394 = vmatprep.subr.mxu0 0.0
    %395 = vmatpush1.msra.mxu0 0.0
    %396 = vmatprep.subr.mxu0 0.0
    %397 = vmatpush1.msra.mxu0 0.0
    %398 = vmatprep.subr.mxu0 0.0
    %399 = vmatpush1.msra.mxu0 0.0
    %400 = vmatprep.mubr.f32.mxu0 0.0
    %401 = vmatmul.mubr.f32.gmra.mrb[0].mxu0 %v313
    %v402 = vpop.f32.mrb[0].mxu0
    %v403 = vadd.f32 0.0, %v402
    %v404 = vpop.f32.mrb[0].mxu0
    %405 = vmatprep.mubr.f32.mxu0 0.0
    %406 = vmatmul.mubr.f32.gmra.mrb[0].mxu0 %v316
    %v407 = vpop.f32.mrb[0].mxu0
    %v408 = vadd.f32 0.0, %v407
    %v409 = vpop.f32.mrb[0].mxu0
    %410 = vmatprep.mubr.f32.mxu0 0.0
    %411 = vmatmul.mubr.f32.gmra.mrb[0].mxu0 %v319
    %v412 = vpop.f32.mrb[0].mxu0
    %v413 = vadd.f32 0.0, %v412
    %v414 = vpop.f32.mrb[0].mxu0
    %415 = vmatprep.mubr.f32.mxu0 0.0
    %416 = vmatmul.mubr.f32.gmra.mrb[0].mxu0 %v322
    %v417 = vpop.f32.mrb[0].mxu0
    %v418 = vadd.f32 0.0, %v417
    %v419 = vpop.f32.mrb[0].mxu0
    %420 = vmatprep.mubr.f32.mxu0 0.0
    %421 = vmatmul.mubr.f32.gmra.mrb[0].mxu0 %v325
    %v422 = vpop.f32.mrb[0].mxu0
    %v423 = vadd.f32 0.0, %v422
    %v424 = vpop.f32.mrb[0].mxu0
    %425 = vmatprep.mubr.f32.mxu0 0.0
    %426 = vmatmul.mubr.f32.gmra.mrb[0].mxu0 %v328
    %v427 = vpop.f32.mrb[0].mxu0
    %v428 = vadd.f32 0.0, %v427
    %v429 = vpop.f32.mrb[0].mxu0
    %430 = vmatprep.mubr.f32.mxu0 0.0
    %431 = vmatmul.mubr.f32.gmra.mrb[0].mxu0 %v331
    %v432 = vpop.f32.mrb[0].mxu0
    %v433 = vadd.f32 0.0, %v432
    %v434 = vpop.f32.mrb[0].mxu0
    %435 = vmatprep.mubr.f32.mxu0 0.0
    %436 = vmatmul.mubr.f32.gmra.mrb[0].mxu0 %v334
    %v437 = vpop.f32.mrb[0].mxu0
    %v438 = vadd.f32 0.0, %v437
    %v439 = vpop.f32.mrb[0].mxu0
    %440 = vdwg.mxu0
    %v441 = vadd.f32 %v262, %v403
    %v442 = vadd.f32 %v267, %v408
    %v443 = vadd.f32 %v272, %v413
    %v444 = vadd.f32 %v277, %v418
    %v445 = vadd.f32 %v282, %v423
    %v446 = vadd.f32 %v287, %v428
    %v447 = vadd.f32 %v292, %v433
    %v448 = vadd.f32 %v297, %v438
    %v449 = vld [vmem:[%s1] sm:$0xff]
    %v450 = vld [vmem:[%s1 + $0x8] sm:$0xff]
    %v451 = vld [vmem:[%s1 + $0x10] sm:$0xff]
    %v452 = vld [vmem:[%s1 + $0x18] sm:$0xff]
    %v453 = vld [vmem:[%s1 + $0x20] sm:$0xff]
    %v454 = vld [vmem:[%s1 + $0x28] sm:$0xff]
    %v455 = vld [vmem:[%s1 + $0x30] sm:$0xff]
    %v456 = vld [vmem:[%s1 + $0x38] sm:$0xff]
    %458 = vset.pattern.permute.xlu0 0
    %459 = vperm.xlu0 %458, %v449
    %v460 = vpop.permute.xlu0 %459
    %463 = vset.pattern.permute.xlu0 0
    %464 = vperm.xlu0 %463, %v450
    %v465 = vpop.permute.xlu0 %464
    %468 = vset.pattern.permute.xlu0 0
    %469 = vperm.xlu0 %468, %v451
    %v470 = vpop.permute.xlu0 %469
    %473 = vset.pattern.permute.xlu0 0
    %474 = vperm.xlu0 %473, %v452
    %v475 = vpop.permute.xlu0 %474
    %478 = vset.pattern.permute.xlu0 0
    %479 = vperm.xlu0 %478, %v453
    %v480 = vpop.permute.xlu0 %479
    %483 = vset.pattern.permute.xlu0 0
    %484 = vperm.xlu0 %483, %v454
    %v485 = vpop.permute.xlu0 %484
    %488 = vset.pattern.permute.xlu0 0
    %489 = vperm.xlu0 %488, %v455
    %v490 = vpop.permute.xlu0 %489
    %493 = vset.pattern.permute.xlu0 0
    %494 = vperm.xlu0 %493, %v456
    %v495 = vpop.permute.xlu0 %494
    %v497 = vmul.f32 %v441, %v460
    %v498 = vmul.f32 %v442, %v465
    %v499 = vmul.f32 %v443, %v470
    %v500 = vmul.f32 %v444, %v475
    %v501 = vmul.f32 %v445, %v480
    %v502 = vmul.f32 %v446, %v485
    %v503 = vmul.f32 %v447, %v490
    %v504 = vmul.f32 %v448, %v495
    %vm505 = vcmask 130048
    %v506 = vsel %vm505, %v497, -inf
    %v507 = vrot.slane %v506, 4
    %v508 = vmax.f32 %v506, %v507
    %v509 = vrot.slane %v508, 2
    %v510 = vmax.f32 %v508, %v509
    %v511 = vrot.slane %v510, 1
    %v512 = vmax.f32 %v510, %v511
    %v513 = vsel %vm505, %v498, -inf
    %v514 = vrot.slane %v513, 4
    %v515 = vmax.f32 %v513, %v514
    %v516 = vrot.slane %v515, 2
    %v517 = vmax.f32 %v515, %v516
    %v518 = vrot.slane %v517, 1
    %v519 = vmax.f32 %v517, %v518
    %v520 = vsel %vm505, %v499, -inf
    %v521 = vrot.slane %v520, 4
    %v522 = vmax.f32 %v520, %v521
    %v523 = vrot.slane %v522, 2
    %v524 = vmax.f32 %v522, %v523
    %v525 = vrot.slane %v524, 1
    %v526 = vmax.f32 %v524, %v525
    %v527 = vsel %vm505, %v500, -inf
    %v528 = vrot.slane %v527, 4
    %v529 = vmax.f32 %v527, %v528
    %v530 = vrot.slane %v529, 2
    %v531 = vmax.f32 %v529, %v530
    %v532 = vrot.slane %v531, 1
    %v533 = vmax.f32 %v531, %v532
    %v534 = vsel %vm505, %v501, -inf
    %v535 = vrot.slane %v534, 4
    %v536 = vmax.f32 %v534, %v535
    %v537 = vrot.slane %v536, 2
    %v538 = vmax.f32 %v536, %v537
    %v539 = vrot.slane %v538, 1
    %v540 = vmax.f32 %v538, %v539
    %v541 = vsel %vm505, %v502, -inf
    %v542 = vrot.slane %v541, 4
    %v543 = vmax.f32 %v541, %v542
    %v544 = vrot.slane %v543, 2
    %v545 = vmax.f32 %v543, %v544
    %v546 = vrot.slane %v545, 1
    %v547 = vmax.f32 %v545, %v546
    %v548 = vsel %vm505, %v503, -inf
    %v549 = vrot.slane %v548, 4
    %v550 = vmax.f32 %v548, %v549
    %v551 = vrot.slane %v550, 2
    %v552 = vmax.f32 %v550, %v551
    %v553 = vrot.slane %v552, 1
    %v554 = vmax.f32 %v552, %v553
    %v555 = vsel %vm505, %v504, -inf
    %v556 = vrot.slane %v555, 4
    %v557 = vmax.f32 %v555, %v556
    %v558 = vrot.slane %v557, 2
    %v559 = vmax.f32 %v557, %v558
    %v560 = vrot.slane %v559, 1
    %v561 = vmax.f32 %v559, %v560
    %v562 = vld [vmem:[%s3 + $0x10] sm:$0x1]
    %v563 = vlaneseq
    %v564 = vshrl.u32 %v563, 7
    %v565 = vsub.s32 0, %v564
    %v566 = vrot.slane %v562, %v565
    %v567 = vadd.f32 %v512, %v566
    %v568 = vadd.f32 %v519, %v566
    %v569 = vadd.f32 %v526, %v566
    %v570 = vadd.f32 %v533, %v566
    %v571 = vadd.f32 %v540, %v566
    %v572 = vadd.f32 %v547, %v566
    %v573 = vadd.f32 %v554, %v566
    %v574 = vadd.f32 %v561, %v566
    %v575 = vtanh.pop %v567
    %v576 = vtanh.pop %v568
    %v577 = vtanh.pop %v569
    %v578 = vtanh.pop %v570
    %v579 = vtanh.pop %v571
    %v580 = vtanh.pop %v572
    %v581 = vtanh.pop %v573
    %v582 = vtanh.pop %v574
    %583 = vset.pattern.permute.xlu0 1
    %584 = vperm.xlu0 %583, %v449
    %v585 = vpop.permute.xlu0 %584
    %587 = vset.pattern.permute.xlu0 1
    %588 = vperm.xlu0 %587, %v450
    %v589 = vpop.permute.xlu0 %588
    %591 = vset.pattern.permute.xlu0 1
    %592 = vperm.xlu0 %591, %v451
    %v593 = vpop.permute.xlu0 %592
    %595 = vset.pattern.permute.xlu0 1
    %596 = vperm.xlu0 %595, %v452
    %v597 = vpop.permute.xlu0 %596
    %599 = vset.pattern.permute.xlu0 1
    %600 = vperm.xlu0 %599, %v453
    %v601 = vpop.permute.xlu0 %600
    %603 = vset.pattern.permute.xlu0 1
    %604 = vperm.xlu0 %603, %v454
    %v605 = vpop.permute.xlu0 %604
    %607 = vset.pattern.permute.xlu0 1
    %608 = vperm.xlu0 %607, %v455
    %v609 = vpop.permute.xlu0 %608
    %611 = vset.pattern.permute.xlu0 1
    %612 = vperm.xlu0 %611, %v456
    %v613 = vpop.permute.xlu0 %612
    %v615 = vmul.f32 %v441, %v585
    %v616 = vmul.f32 %v442, %v589
    %v617 = vmul.f32 %v443, %v593
    %v618 = vmul.f32 %v444, %v597
    %v619 = vmul.f32 %v445, %v601
    %v620 = vmul.f32 %v446, %v605
    %v621 = vmul.f32 %v447, %v609
    %v622 = vmul.f32 %v448, %v613
    %v623 = vsel %vm505, %v615, -inf
    %v624 = vrot.slane %v623, 4
    %v625 = vmax.f32 %v623, %v624
    %v626 = vrot.slane %v625, 2
    %v627 = vmax.f32 %v625, %v626
    %v628 = vrot.slane %v627, 1
    %v629 = vmax.f32 %v627, %v628
    %v630 = vsel %vm505, %v616, -inf
    %v631 = vrot.slane %v630, 4
    %v632 = vmax.f32 %v630, %v631
    %v633 = vrot.slane %v632, 2
    %v634 = vmax.f32 %v632, %v633
    %v635 = vrot.slane %v634, 1
    %v636 = vmax.f32 %v634, %v635
    %v637 = vsel %vm505, %v617, -inf
    %v638 = vrot.slane %v637, 4
    %v639 = vmax.f32 %v637, %v638
    %v640 = vrot.slane %v639, 2
    %v641 = vmax.f32 %v639, %v640
    %v642 = vrot.slane %v641, 1
    %v643 = vmax.f32 %v641, %v642
    %v644 = vsel %vm505, %v618, -inf
    %v645 = vrot.slane %v644, 4
    %v646 = vmax.f32 %v644, %v645
    %v647 = vrot.slane %v646, 2
    %v648 = vmax.f32 %v646, %v647
    %v649 = vrot.slane %v648, 1
    %v650 = vmax.f32 %v648, %v649
    %v651 = vsel %vm505, %v619, -inf
    %v652 = vrot.slane %v651, 4
    %v653 = vmax.f32 %v651, %v652
    %v654 = vrot.slane %v653, 2
    %v655 = vmax.f32 %v653, %v654
    %v656 = vrot.slane %v655, 1
    %v657 = vmax.f32 %v655, %v656
    %v658 = vsel %vm505, %v620, -inf
    %v659 = vrot.slane %v658, 4
    %v660 = vmax.f32 %v658, %v659
    %v661 = vrot.slane %v660, 2
    %v662 = vmax.f32 %v660, %v661
    %v663 = vrot.slane %v662, 1
    %v664 = vmax.f32 %v662, %v663
    %v665 = vsel %vm505, %v621, -inf
    %v666 = vrot.slane %v665, 4
    %v667 = vmax.f32 %v665, %v666
    %v668 = vrot.slane %v667, 2
    %v669 = vmax.f32 %v667, %v668
    %v670 = vrot.slane %v669, 1
    %v671 = vmax.f32 %v669, %v670
    %v672 = vsel %vm505, %v622, -inf
    %v673 = vrot.slane %v672, 4
    %v674 = vmax.f32 %v672, %v673
    %v675 = vrot.slane %v674, 2
    %v676 = vmax.f32 %v674, %v675
    %v677 = vrot.slane %v676, 1
    %v678 = vmax.f32 %v676, %v677
    %s679 = scalar_lea.vmem %s3, 24
    %v680 = vld [vmem:[%s679 + $0x10] sm:$0x1]
    %v681 = vlaneseq
    %v682 = vshrl.u32 %v681, 7
    %v683 = vsub.s32 0, %v682
    %v684 = vrot.slane %v680, %v683
    %v685 = vadd.f32 %v629, %v684
    %v686 = vadd.f32 %v636, %v684
    %v687 = vadd.f32 %v643, %v684
    %v688 = vadd.f32 %v650, %v684
    %v689 = vadd.f32 %v657, %v684
    %v690 = vadd.f32 %v664, %v684
    %v691 = vadd.f32 %v671, %v684
    %v692 = vadd.f32 %v678, %v684
    %v693 = vtanh.pop %v685
    %v694 = vtanh.pop %v686
    %v695 = vtanh.pop %v687
    %v696 = vtanh.pop %v688
    %v697 = vtanh.pop %v689
    %v698 = vtanh.pop %v690
    %v699 = vtanh.pop %v691
    %v700 = vtanh.pop %v692
    %701 = vset.pattern.permute.xlu0 2
    %702 = vperm.xlu0 %701, %v449
    %v703 = vpop.permute.xlu0 %702
    %705 = vset.pattern.permute.xlu0 2
    %706 = vperm.xlu0 %705, %v450
    %v707 = vpop.permute.xlu0 %706
    %709 = vset.pattern.permute.xlu0 2
    %710 = vperm.xlu0 %709, %v451
    %v711 = vpop.permute.xlu0 %710
    %713 = vset.pattern.permute.xlu0 2
    %714 = vperm.xlu0 %713, %v452
    %v715 = vpop.permute.xlu0 %714
    %717 = vset.pattern.permute.xlu0 2
    %718 = vperm.xlu0 %717, %v453
    %v719 = vpop.permute.xlu0 %718
    %721 = vset.pattern.permute.xlu0 2
    %722 = vperm.xlu0 %721, %v454
    %v723 = vpop.permute.xlu0 %722
    %725 = vset.pattern.permute.xlu0 2
    %726 = vperm.xlu0 %725, %v455
    %v727 = vpop.permute.xlu0 %726
    %729 = vset.pattern.permute.xlu0 2
    %730 = vperm.xlu0 %729, %v456
    %v731 = vpop.permute.xlu0 %730
    %v733 = vmul.f32 %v441, %v703
    %v734 = vmul.f32 %v442, %v707
    %v735 = vmul.f32 %v443, %v711
    %v736 = vmul.f32 %v444, %v715
    %v737 = vmul.f32 %v445, %v719
    %v738 = vmul.f32 %v446, %v723
    %v739 = vmul.f32 %v447, %v727
    %v740 = vmul.f32 %v448, %v731
    %v741 = vsel %vm505, %v733, -inf
    %v742 = vrot.slane %v741, 4
    %v743 = vmax.f32 %v741, %v742
    %v744 = vrot.slane %v743, 2
    %v745 = vmax.f32 %v743, %v744
    %v746 = vrot.slane %v745, 1
    %v747 = vmax.f32 %v745, %v746
    %v748 = vsel %vm505, %v734, -inf
    %v749 = vrot.slane %v748, 4
    %v750 = vmax.f32 %v748, %v749
    %v751 = vrot.slane %v750, 2
    %v752 = vmax.f32 %v750, %v751
    %v753 = vrot.slane %v752, 1
    %v754 = vmax.f32 %v752, %v753
    %v755 = vsel %vm505, %v735, -inf
    %v756 = vrot.slane %v755, 4
    %v757 = vmax.f32 %v755, %v756
    %v758 = vrot.slane %v757, 2
    %v759 = vmax.f32 %v757, %v758
    %v760 = vrot.slane %v759, 1
    %v761 = vmax.f32 %v759, %v760
    %v762 = vsel %vm505, %v736, -inf
    %v763 = vrot.slane %v762, 4
    %v764 = vmax.f32 %v762, %v763
    %v765 = vrot.slane %v764, 2
    %v766 = vmax.f32 %v764, %v765
    %v767 = vrot.slane %v766, 1
    %v768 = vmax.f32 %v766, %v767
    %v769 = vsel %vm505, %v737, -inf
    %v770 = vrot.slane %v769, 4
    %v771 = vmax.f32 %v769, %v770
    %v772 = vrot.slane %v771, 2
    %v773 = vmax.f32 %v771, %v772
    %v774 = vrot.slane %v773, 1
    %v775 = vmax.f32 %v773, %v774
    %v776 = vsel %vm505, %v738, -inf
    %v777 = vrot.slane %v776, 4
    %v778 = vmax.f32 %v776, %v777
    %v779 = vrot.slane %v778, 2
    %v780 = vmax.f32 %v778, %v779
    %v781 = vrot.slane %v780, 1
    %v782 = vmax.f32 %v780, %v781
    %v783 = vsel %vm505, %v739, -inf
    %v784 = vrot.slane %v783, 4
    %v785 = vmax.f32 %v783, %v784
    %v786 = vrot.slane %v785, 2
    %v787 = vmax.f32 %v785, %v786
    %v788 = vrot.slane %v787, 1
    %v789 = vmax.f32 %v787, %v788
    %v790 = vsel %vm505, %v740, -inf
    %v791 = vrot.slane %v790, 4
    %v792 = vmax.f32 %v790, %v791
    %v793 = vrot.slane %v792, 2
    %v794 = vmax.f32 %v792, %v793
    %v795 = vrot.slane %v794, 1
    %v796 = vmax.f32 %v794, %v795
    %s797 = scalar_lea.vmem %s3, 48
    %v798 = vld [vmem:[%s797 + $0x10] sm:$0x1]
    %v799 = vlaneseq
    %v800 = vshrl.u32 %v799, 7
    %v801 = vsub.s32 0, %v800
    %v802 = vrot.slane %v798, %v801
    %v803 = vadd.f32 %v747, %v802
    %v804 = vadd.f32 %v754, %v802
    %v805 = vadd.f32 %v761, %v802
    %v806 = vadd.f32 %v768, %v802
    %v807 = vadd.f32 %v775, %v802
    %v808 = vadd.f32 %v782, %v802
    %v809 = vadd.f32 %v789, %v802
    %v810 = vadd.f32 %v796, %v802
    %v811 = vtanh.pop %v803
    %v812 = vtanh.pop %v804
    %v813 = vtanh.pop %v805
    %v814 = vtanh.pop %v806
    %v815 = vtanh.pop %v807
    %v816 = vtanh.pop %v808
    %v817 = vtanh.pop %v809
    %v818 = vtanh.pop %v810
    %v819 = vld [vmem:[%s3] sm:$0xff]
    %v820 = vld [vmem:[%s679] sm:$0xff]
    %v825 = vrot.slane %v694, 7
    %vm826 = vcmask 1041409
    %v827 = vsel %vm826, %v825, %v693
    %v828 = vrot.slane %v695, 6
    %vm829 = vcmask 1042434
    %v830 = vsel %vm829, %v828, %v827
    %v831 = vrot.slane %v696, 5
    %vm832 = vcmask 1043459
    %v833 = vsel %vm832, %v831, %v830
    %v835 = vsel %vm505, %v820, 0
    %v837 = vsel %vm505, %v833, 0
    %839 = vmatprep.subr.mxu0 0.0
    %840 = vmatpush1.xpose.msra.mxu0 %v837
    %841 = vmatprep.subr.mxu0 0.0
    %842 = vmatpush1.xpose.msra.mxu0 0.0
    %843 = vmatprep.subr.mxu0 0.0
    %844 = vmatpush1.xpose.msra.mxu0 0.0
    %845 = vmatprep.subr.mxu0 0.0
    %846 = vmatpush1.xpose.msra.mxu0 0.0
    %847 = vmatprep.subr.mxu0 0.0
    %848 = vmatpush1.xpose.msra.mxu0 0.0
    %849 = vmatprep.subr.mxu0 0.0
    %850 = vmatpush1.xpose.msra.mxu0 0.0
    %851 = vmatprep.subr.mxu0 0.0
    %852 = vmatpush1.xpose.msra.mxu0 0.0
    %853 = vmatprep.subr.mxu0 0.0
    %854 = vmatpush1.xpose.msra.mxu0 0.0
    %855 = vmatprep.subr.mxu0 0.0
    %856 = vmatpush1.xpose.msra.mxu0 0.0
    %857 = vmatprep.subr.mxu0 0.0
    %858 = vmatpush1.xpose.msra.mxu0 0.0
    %859 = vmatprep.subr.mxu0 0.0
    %860 = vmatpush1.xpose.msra.mxu0 0.0
    %861 = vmatprep.subr.mxu0 0.0
    %862 = vmatpush1.xpose.msra.mxu0 0.0
    %863 = vmatprep.subr.mxu0 0.0
    %864 = vmatpush1.xpose.msra.mxu0 0.0
    %865 = vmatprep.subr.mxu0 0.0
    %866 = vmatpush1.xpose.msra.mxu0 0.0
    %867 = vmatprep.subr.mxu0 0.0
    %868 = vmatpush1.xpose.msra.mxu0 0.0
    %869 = vmatprep.subr.mxu0 0.0
    %870 = vmatpush1.xpose.msra.mxu0 0.0
    %871 = vmatprep.subr.mxu0 0.0
    %872 = vmatpush1.xpose.msra.mxu0 0.0
    %873 = vmatprep.subr.mxu0 0.0
    %874 = vmatpush1.xpose.msra.mxu0 0.0
    %875 = vmatprep.subr.mxu0 0.0
    %876 = vmatpush1.xpose.msra.mxu0 0.0
    %877 = vmatprep.subr.mxu0 0.0
    %878 = vmatpush1.xpose.msra.mxu0 0.0
    %879 = vmatprep.subr.mxu0 0.0
    %880 = vmatpush1.xpose.msra.mxu0 0.0
    %881 = vmatprep.subr.mxu0 0.0
    %882 = vmatpush1.xpose.msra.mxu0 0.0
    %883 = vmatprep.subr.mxu0 0.0
    %884 = vmatpush1.xpose.msra.mxu0 0.0
    %885 = vmatprep.subr.mxu0 0.0
    %886 = vmatpush1.xpose.msra.mxu0 0.0
    %887 = vmatprep.subr.mxu0 0.0
    %888 = vmatpush1.xpose.msra.mxu0 0.0
    %889 = vmatprep.subr.mxu0 0.0
    %890 = vmatpush1.xpose.msra.mxu0 0.0
    %891 = vmatprep.subr.mxu0 0.0
    %892 = vmatpush1.xpose.msra.mxu0 0.0
    %893 = vmatprep.subr.mxu0 0.0
    %894 = vmatpush1.xpose.msra.mxu0 0.0
    %895 = vmatprep.subr.mxu0 0.0
    %896 = vmatpush1.xpose.msra.mxu0 0.0
    %897 = vmatprep.subr.mxu0 0.0
    %898 = vmatpush1.xpose.msra.mxu0 0.0
    %899 = vmatprep.subr.mxu0 0.0
    %900 = vmatpush1.xpose.msra.mxu0 0.0
    %901 = vmatprep.subr.mxu0 0.0
    %902 = vmatpush1.xpose.msra.mxu0 0.0
    %903 = vmatprep.mubr.f32.mxu0 0.0
    %904 = vmatmul.mubr.f32.gmra.mrb[0].mxu0 %v835
    %v905 = vpop.f32.mrb[0].mxu0
    %v906 = vadd.f32 0.0, %v905
    %v907 = vpop.f32.mrb[0].mxu0
    %908 = vdwg.mxu0
    %v913 = vrot.slane %v698, 7
    %v914 = vsel %vm826, %v913, %v697
    %v915 = vrot.slane %v699, 6
    %v916 = vsel %vm829, %v915, %v914
    %v917 = vrot.slane %v700, 5
    %v918 = vsel %vm832, %v917, %v916
    %v919 = vsel %vm505, %v918, 0
    %921 = vmatprep.subr.mxu0 0.0
    %922 = vmatpush1.xpose.msra.mxu0 %v919
    %923 = vmatprep.subr.mxu0 0.0
    %924 = vmatpush1.xpose.msra.mxu0 0.0
    %925 = vmatprep.subr.mxu0 0.0
    %926 = vmatpush1.xpose.msra.mxu0 0.0
    %927 = vmatprep.subr.mxu0 0.0
    %928 = vmatpush1.xpose.msra.mxu0 0.0
    %929 = vmatprep.subr.mxu0 0.0
    %930 = vmatpush1.xpose.msra.mxu0 0.0
    %931 = vmatprep.subr.mxu0 0.0
    %932 = vmatpush1.xpose.msra.mxu0 0.0
    %933 = vmatprep.subr.mxu0 0.0
    %934 = vmatpush1.xpose.msra.mxu0 0.0
    %935 = vmatprep.subr.mxu0 0.0
    %936 = vmatpush1.xpose.msra.mxu0 0.0
    %937 = vmatprep.subr.mxu0 0.0
    %938 = vmatpush1.xpose.msra.mxu0 0.0
    %939 = vmatprep.subr.mxu0 0.0
    %940 = vmatpush1.xpose.msra.mxu0 0.0
    %941 = vmatprep.subr.mxu0 0.0
    %942 = vmatpush1.xpose.msra.mxu0 0.0
    %943 = vmatprep.subr.mxu0 0.0
    %944 = vmatpush1.xpose.msra.mxu0 0.0
    %945 = vmatprep.subr.mxu0 0.0
    %946 = vmatpush1.xpose.msra.mxu0 0.0
    %947 = vmatprep.subr.mxu0 0.0
    %948 = vmatpush1.xpose.msra.mxu0 0.0
    %949 = vmatprep.subr.mxu0 0.0
    %950 = vmatpush1.xpose.msra.mxu0 0.0
    %951 = vmatprep.subr.mxu0 0.0
    %952 = vmatpush1.xpose.msra.mxu0 0.0
    %953 = vmatprep.subr.mxu0 0.0
    %954 = vmatpush1.xpose.msra.mxu0 0.0
    %955 = vmatprep.subr.mxu0 0.0
    %956 = vmatpush1.xpose.msra.mxu0 0.0
    %957 = vmatprep.subr.mxu0 0.0
    %958 = vmatpush1.xpose.msra.mxu0 0.0
    %959 = vmatprep.subr.mxu0 0.0
    %960 = vmatpush1.xpose.msra.mxu0 0.0
    %961 = vmatprep.subr.mxu0 0.0
    %962 = vmatpush1.xpose.msra.mxu0 0.0
    %963 = vmatprep.subr.mxu0 0.0
    %964 = vmatpush1.xpose.msra.mxu0 0.0
    %965 = vmatprep.subr.mxu0 0.0
    %966 = vmatpush1.xpose.msra.mxu0 0.0
    %967 = vmatprep.subr.mxu0 0.0
    %968 = vmatpush1.xpose.msra.mxu0 0.0
    %969 = vmatprep.subr.mxu0 0.0
    %970 = vmatpush1.xpose.msra.mxu0 0.0
    %971 = vmatprep.subr.mxu0 0.0
    %972 = vmatpush1.xpose.msra.mxu0 0.0
    %973 = vmatprep.subr.mxu0 0.0
    %974 = vmatpush1.xpose.msra.mxu0 0.0
    %975 = vmatprep.subr.mxu0 0.0
    %976 = vmatpush1.xpose.msra.mxu0 0.0
    %977 = vmatprep.subr.mxu0 0.0
    %978 = vmatpush1.xpose.msra.mxu0 0.0
    %979 = vmatprep.subr.mxu0 0.0
    %980 = vmatpush1.xpose.msra.mxu0 0.0
    %981 = vmatprep.subr.mxu0 0.0
    %982 = vmatpush1.xpose.msra.mxu0 0.0
    %983 = vmatprep.subr.mxu0 0.0
    %984 = vmatpush1.xpose.msra.mxu0 0.0
    %985 = vmatprep.mubr.f32.mxu0 0.0
    %986 = vmatmul.mubr.f32.gmra.mrb[0].mxu0 %v835
    %v987 = vpop.f32.mrb[0].mxu0
    %v988 = vadd.f32 0.0, %v987
    %v989 = vpop.f32.mrb[0].mxu0
    %990 = vdwg.mxu0
    %v995 = vrot.slane %v576, 7
    %v996 = vsel %vm826, %v995, %v575
    %v997 = vrot.slane %v577, 6
    %v998 = vsel %vm829, %v997, %v996
    %v999 = vrot.slane %v578, 5
    %v1000 = vsel %vm832, %v999, %v998
    %v1002 = vsel %vm505, %v819, 0
    %v1004 = vsel %vm505, %v1000, 0
    %1006 = vmatprep.subr.mxu0 0.0
    %1007 = vmatpush1.xpose.msra.mxu0 %v1004
    %1008 = vmatprep.subr.mxu0 0.0
    %1009 = vmatpush1.xpose.msra.mxu0 0.0
    %1010 = vmatprep.subr.mxu0 0.0
    %1011 = vmatpush1.xpose.msra.mxu0 0.0
    %1012 = vmatprep.subr.mxu0 0.0
    %1013 = vmatpush1.xpose.msra.mxu0 0.0
    %1014 = vmatprep.subr.mxu0 0.0
    %1015 = vmatpush1.xpose.msra.mxu0 0.0
    %1016 = vmatprep.subr.mxu0 0.0
    %1017 = vmatpush1.xpose.msra.mxu0 0.0
    %1018 = vmatprep.subr.mxu0 0.0
    %1019 = vmatpush1.xpose.msra.mxu0 0.0
    %1020 = vmatprep.subr.mxu0 0.0
    %1021 = vmatpush1.xpose.msra.mxu0 0.0
    %1022 = vmatprep.subr.mxu0 0.0
    %1023 = vmatpush1.xpose.msra.mxu0 0.0
    %1024 = vmatprep.subr.mxu0 0.0
    %1025 = vmatpush1.xpose.msra.mxu0 0.0
    %1026 = vmatprep.subr.mxu0 0.0
    %1027 = vmatpush1.xpose.msra.mxu0 0.0
    %1028 = vmatprep.subr.mxu0 0.0
    %1029 = vmatpush1.xpose.msra.mxu0 0.0
    %1030 = vmatprep.subr.mxu0 0.0
    %1031 = vmatpush1.xpose.msra.mxu0 0.0
    %1032 = vmatprep.subr.mxu0 0.0
    %1033 = vmatpush1.xpose.msra.mxu0 0.0
    %1034 = vmatprep.subr.mxu0 0.0
    %1035 = vmatpush1.xpose.msra.mxu0 0.0
    %1036 = vmatprep.subr.mxu0 0.0
    %1037 = vmatpush1.xpose.msra.mxu0 0.0
    %1038 = vmatprep.subr.mxu0 0.0
    %1039 = vmatpush1.xpose.msra.mxu0 0.0
    %1040 = vmatprep.subr.mxu0 0.0
    %1041 = vmatpush1.xpose.msra.mxu0 0.0
    %1042 = vmatprep.subr.mxu0 0.0
    %1043 = vmatpush1.xpose.msra.mxu0 0.0
    %1044 = vmatprep.subr.mxu0 0.0
    %1045 = vmatpush1.xpose.msra.mxu0 0.0
    %1046 = vmatprep.subr.mxu0 0.0
    %1047 = vmatpush1.xpose.msra.mxu0 0.0
    %1048 = vmatprep.subr.mxu0 0.0
    %1049 = vmatpush1.xpose.msra.mxu0 0.0
    %1050 = vmatprep.subr.mxu0 0.0
    %1051 = vmatpush1.xpose.msra.mxu0 0.0
    %1052 = vmatprep.subr.mxu0 0.0
    %1053 = vmatpush1.xpose.msra.mxu0 0.0
    %1054 = vmatprep.subr.mxu0 0.0
    %1055 = vmatpush1.xpose.msra.mxu0 0.0
    %1056 = vmatprep.subr.mxu0 0.0
    %1057 = vmatpush1.xpose.msra.mxu0 0.0
    %1058 = vmatprep.subr.mxu0 0.0
    %1059 = vmatpush1.xpose.msra.mxu0 0.0
    %1060 = vmatprep.subr.mxu0 0.0
    %1061 = vmatpush1.xpose.msra.mxu0 0.0
    %1062 = vmatprep.subr.mxu0 0.0
    %1063 = vmatpush1.xpose.msra.mxu0 0.0
    %1064 = vmatprep.subr.mxu0 0.0
    %1065 = vmatpush1.xpose.msra.mxu0 0.0
    %1066 = vmatprep.subr.mxu0 0.0
    %1067 = vmatpush1.xpose.msra.mxu0 0.0
    %1068 = vmatprep.subr.mxu0 0.0
    %1069 = vmatpush1.xpose.msra.mxu0 0.0
    %1070 = vmatprep.mubr.f32.mxu0 0.0
    %1071 = vmatmul.mubr.f32.gmra.mrb[0].mxu0 %v1002
    %v1072 = vpop.f32.mrb[0].mxu0
    %v1073 = vadd.f32 %v906, %v1072
    %v1074 = vpop.f32.mrb[0].mxu0
    %1075 = vdwg.mxu0
    %v1080 = vrot.slane %v580, 7
    %v1081 = vsel %vm826, %v1080, %v579
    %v1082 = vrot.slane %v581, 6
    %v1083 = vsel %vm829, %v1082, %v1081
    %v1084 = vrot.slane %v582, 5
    %v1085 = vsel %vm832, %v1084, %v1083
    %v1086 = vsel %vm505, %v1085, 0
    %1088 = vmatprep.subr.mxu0 0.0
    %1089 = vmatpush1.xpose.msra.mxu0 %v1086
    %1090 = vmatprep.subr.mxu0 0.0
    %1091 = vmatpush1.xpose.msra.mxu0 0.0
    %1092 = vmatprep.subr.mxu0 0.0
    %1093 = vmatpush1.xpose.msra.mxu0 0.0
    %1094 = vmatprep.subr.mxu0 0.0
    %1095 = vmatpush1.xpose.msra.mxu0 0.0
    %1096 = vmatprep.subr.mxu0 0.0
    %1097 = vmatpush1.xpose.msra.mxu0 0.0
    %1098 = vmatprep.subr.mxu0 0.0
    %1099 = vmatpush1.xpose.msra.mxu0 0.0
    %1100 = vmatprep.subr.mxu0 0.0
    %1101 = vmatpush1.xpose.msra.mxu0 0.0
    %1102 = vmatprep.subr.mxu0 0.0
    %1103 = vmatpush1.xpose.msra.mxu0 0.0
    %1104 = vmatprep.subr.mxu0 0.0
    %1105 = vmatpush1.xpose.msra.mxu0 0.0
    %1106 = vmatprep.subr.mxu0 0.0
    %1107 = vmatpush1.xpose.msra.mxu0 0.0
    %1108 = vmatprep.subr.mxu0 0.0
    %1109 = vmatpush1.xpose.msra.mxu0 0.0
    %1110 = vmatprep.subr.mxu0 0.0
    %1111 = vmatpush1.xpose.msra.mxu0 0.0
    %1112 = vmatprep.subr.mxu0 0.0
    %1113 = vmatpush1.xpose.msra.mxu0 0.0
    %1114 = vmatprep.subr.mxu0 0.0
    %1115 = vmatpush1.xpose.msra.mxu0 0.0
    %1116 = vmatprep.subr.mxu0 0.0
    %1117 = vmatpush1.xpose.msra.mxu0 0.0
    %1118 = vmatprep.subr.mxu0 0.0
    %1119 = vmatpush1.xpose.msra.mxu0 0.0
    %1120 = vmatprep.subr.mxu0 0.0
    %1121 = vmatpush1.xpose.msra.mxu0 0.0
    %1122 = vmatprep.subr.mxu0 0.0
    %1123 = vmatpush1.xpose.msra.mxu0 0.0
    %1124 = vmatprep.subr.mxu0 0.0
    %1125 = vmatpush1.xpose.msra.mxu0 0.0
    %1126 = vmatprep.subr.mxu0 0.0
    %1127 = vmatpush1.xpose.msra.mxu0 0.0
    %1128 = vmatprep.subr.mxu0 0.0
    %1129 = vmatpush1.xpose.msra.mxu0 0.0
    %1130 = vmatprep.subr.mxu0 0.0
    %1131 = vmatpush1.xpose.msra.mxu0 0.0
    %1132 = vmatprep.subr.mxu0 0.0
    %1133 = vmatpush1.xpose.msra.mxu0 0.0
    %1134 = vmatprep.subr.mxu0 0.0
    %1135 = vmatpush1.xpose.msra.mxu0 0.0
    %1136 = vmatprep.subr.mxu0 0.0
    %1137 = vmatpush1.xpose.msra.mxu0 0.0
    %1138 = vmatprep.subr.mxu0 0.0
    %1139 = vmatpush1.xpose.msra.mxu0 0.0
    %1140 = vmatprep.subr.mxu0 0.0
    %1141 = vmatpush1.xpose.msra.mxu0 0.0
    %1142 = vmatprep.subr.mxu0 0.0
    %1143 = vmatpush1.xpose.msra.mxu0 0.0
    %1144 = vmatprep.subr.mxu0 0.0
    %1145 = vmatpush1.xpose.msra.mxu0 0.0
    %1146 = vmatprep.subr.mxu0 0.0
    %1147 = vmatpush1.xpose.msra.mxu0 0.0
    %1148 = vmatprep.subr.mxu0 0.0
    %1149 = vmatpush1.xpose.msra.mxu0 0.0
    %1150 = vmatprep.subr.mxu0 0.0
    %1151 = vmatpush1.xpose.msra.mxu0 0.0
    %1152 = vmatprep.mubr.f32.mxu0 0.0
    %1153 = vmatmul.mubr.f32.gmra.mrb[0].mxu0 %v1002
    %v1154 = vpop.f32.mrb[0].mxu0
    %v1155 = vadd.f32 %v988, %v1154
    %v1156 = vpop.f32.mrb[0].mxu0
    %1157 = vdwg.mxu0
    %v1158 = vld [vmem:[%s797] sm:$0xff]
    %v1163 = vrot.slane %v812, 7
    %v1164 = vsel %vm826, %v1163, %v811
    %v1165 = vrot.slane %v813, 6
    %v1166 = vsel %vm829, %v1165, %v1164
    %v1167 = vrot.slane %v814, 5
    %v1168 = vsel %vm832, %v1167, %v1166
    %v1170 = vsel %vm505, %v1158, 0
    %v1172 = vsel %vm505, %v1168, 0
    %1174 = vmatprep.subr.mxu0 0.0
    %1175 = vmatpush1.xpose.msra.mxu0 %v1172
    %1176 = vmatprep.subr.mxu0 0.0
    %1177 = vmatpush1.xpose.msra.mxu0 0.0
    %1178 = vmatprep.subr.mxu0 0.0
    %1179 = vmatpush1.xpose.msra.mxu0 0.0
    %1180 = vmatprep.subr.mxu0 0.0
    %1181 = vmatpush1.xpose.msra.mxu0 0.0
    %1182 = vmatprep.subr.mxu0 0.0
    %1183 = vmatpush1.xpose.msra.mxu0 0.0
    %1184 = vmatprep.subr.mxu0 0.0
    %1185 = vmatpush1.xpose.msra.mxu0 0.0
    %1186 = vmatprep.subr.mxu0 0.0
    %1187 = vmatpush1.xpose.msra.mxu0 0.0
    %1188 = vmatprep.subr.mxu0 0.0
    %1189 = vmatpush1.xpose.msra.mxu0 0.0
    %1190 = vmatprep.subr.mxu0 0.0
    %1191 = vmatpush1.xpose.msra.mxu0 0.0
    %1192 = vmatprep.subr.mxu0 0.0
    %1193 = vmatpush1.xpose.msra.mxu0 0.0
    %1194 = vmatprep.subr.mxu0 0.0
    %1195 = vmatpush1.xpose.msra.mxu0 0.0
    %1196 = vmatprep.subr.mxu0 0.0
    %1197 = vmatpush1.xpose.msra.mxu0 0.0
    %1198 = vmatprep.subr.mxu0 0.0
    %1199 = vmatpush1.xpose.msra.mxu0 0.0
    %1200 = vmatprep.subr.mxu0 0.0
    %1201 = vmatpush1.xpose.msra.mxu0 0.0
    %1202 = vmatprep.subr.mxu0 0.0
    %1203 = vmatpush1.xpose.msra.mxu0 0.0
    %1204 = vmatprep.subr.mxu0 0.0
    %1205 = vmatpush1.xpose.msra.mxu0 0.0
    %1206 = vmatprep.subr.mxu0 0.0
    %1207 = vmatpush1.xpose.msra.mxu0 0.0
    %1208 = vmatprep.subr.mxu0 0.0
    %1209 = vmatpush1.xpose.msra.mxu0 0.0
    %1210 = vmatprep.subr.mxu0 0.0
    %1211 = vmatpush1.xpose.msra.mxu0 0.0
    %1212 = vmatprep.subr.mxu0 0.0
    %1213 = vmatpush1.xpose.msra.mxu0 0.0
    %1214 = vmatprep.subr.mxu0 0.0
    %1215 = vmatpush1.xpose.msra.mxu0 0.0
    %1216 = vmatprep.subr.mxu0 0.0
    %1217 = vmatpush1.xpose.msra.mxu0 0.0
    %1218 = vmatprep.subr.mxu0 0.0
    %1219 = vmatpush1.xpose.msra.mxu0 0.0
    %1220 = vmatprep.subr.mxu0 0.0
    %1221 = vmatpush1.xpose.msra.mxu0 0.0
    %1222 = vmatprep.subr.mxu0 0.0
    %1223 = vmatpush1.xpose.msra.mxu0 0.0
    %1224 = vmatprep.subr.mxu0 0.0
    %1225 = vmatpush1.xpose.msra.mxu0 0.0
    %1226 = vmatprep.subr.mxu0 0.0
    %1227 = vmatpush1.xpose.msra.mxu0 0.0
    %1228 = vmatprep.subr.mxu0 0.0
    %1229 = vmatpush1.xpose.msra.mxu0 0.0
    %1230 = vmatprep.subr.mxu0 0.0
    %1231 = vmatpush1.xpose.msra.mxu0 0.0
    %1232 = vmatprep.subr.mxu0 0.0
    %1233 = vmatpush1.xpose.msra.mxu0 0.0
    %1234 = vmatprep.subr.mxu0 0.0
    %1235 = vmatpush1.xpose.msra.mxu0 0.0
    %1236 = vmatprep.subr.mxu0 0.0
    %1237 = vmatpush1.xpose.msra.mxu0 0.0
    %1238 = vmatprep.mubr.f32.mxu0 0.0
    %1239 = vmatmul.mubr.f32.gmra.mrb[0].mxu0 %v1170
    %v1240 = vpop.f32.mrb[0].mxu0
    %v1241 = vadd.f32 0.0, %v1240
    %v1242 = vpop.f32.mrb[0].mxu0
    %1243 = vdwg.mxu0
    %v1248 = vrot.slane %v816, 7
    %v1249 = vsel %vm826, %v1248, %v815
    %v1250 = vrot.slane %v817, 6
    %v1251 = vsel %vm829, %v1250, %v1249
    %v1252 = vrot.slane %v818, 5
    %v1253 = vsel %vm832, %v1252, %v1251
    %v1254 = vsel %vm505, %v1253, 0
    %1256 = vmatprep.subr.mxu0 0.0
    %1257 = vmatpush1.xpose.msra.mxu0 %v1254
    %1258 = vmatprep.subr.mxu0 0.0
    %1259 = vmatpush1.xpose.msra.mxu0 0.0
    %1260 = vmatprep.subr.mxu0 0.0
    %1261 = vmatpush1.xpose.msra.mxu0 0.0
    %1262 = vmatprep.subr.mxu0 0.0
    %1263 = vmatpush1.xpose.msra.mxu0 0.0
    %1264 = vmatprep.subr.mxu0 0.0
    %1265 = vmatpush1.xpose.msra.mxu0 0.0
    %1266 = vmatprep.subr.mxu0 0.0
    %1267 = vmatpush1.xpose.msra.mxu0 0.0
    %1268 = vmatprep.subr.mxu0 0.0
    %1269 = vmatpush1.xpose.msra.mxu0 0.0
    %1270 = vmatprep.subr.mxu0 0.0
    %1271 = vmatpush1.xpose.msra.mxu0 0.0
    %1272 = vmatprep.subr.mxu0 0.0
    %1273 = vmatpush1.xpose.msra.mxu0 0.0
    %1274 = vmatprep.subr.mxu0 0.0
    %1275 = vmatpush1.xpose.msra.mxu0 0.0
    %1276 = vmatprep.subr.mxu0 0.0
    %1277 = vmatpush1.xpose.msra.mxu0 0.0
    %1278 = vmatprep.subr.mxu0 0.0
    %1279 = vmatpush1.xpose.msra.mxu0 0.0
    %1280 = vmatprep.subr.mxu0 0.0
    %1281 = vmatpush1.xpose.msra.mxu0 0.0
    %1282 = vmatprep.subr.mxu0 0.0
    %1283 = vmatpush1.xpose.msra.mxu0 0.0
    %1284 = vmatprep.subr.mxu0 0.0
    %1285 = vmatpush1.xpose.msra.mxu0 0.0
    %1286 = vmatprep.subr.mxu0 0.0
    %1287 = vmatpush1.xpose.msra.mxu0 0.0
    %1288 = vmatprep.subr.mxu0 0.0
    %1289 = vmatpush1.xpose.msra.mxu0 0.0
    %1290 = vmatprep.subr.mxu0 0.0
    %1291 = vmatpush1.xpose.msra.mxu0 0.0
    %1292 = vmatprep.subr.mxu0 0.0
    %1293 = vmatpush1.xpose.msra.mxu0 0.0
    %1294 = vmatprep.subr.mxu0 0.0
    %1295 = vmatpush1.xpose.msra.mxu0 0.0
    %1296 = vmatprep.subr.mxu0 0.0
    %1297 = vmatpush1.xpose.msra.mxu0 0.0
    %1298 = vmatprep.subr.mxu0 0.0
    %1299 = vmatpush1.xpose.msra.mxu0 0.0
    %1300 = vmatprep.subr.mxu0 0.0
    %1301 = vmatpush1.xpose.msra.mxu0 0.0
    %1302 = vmatprep.subr.mxu0 0.0
    %1303 = vmatpush1.xpose.msra.mxu0 0.0
    %1304 = vmatprep.subr.mxu0 0.0
    %1305 = vmatpush1.xpose.msra.mxu0 0.0
    %1306 = vmatprep.subr.mxu0 0.0
    %1307 = vmatpush1.xpose.msra.mxu0 0.0
    %1308 = vmatprep.subr.mxu0 0.0
    %1309 = vmatpush1.xpose.msra.mxu0 0.0
    %1310 = vmatprep.subr.mxu0 0.0
    %1311 = vmatpush1.xpose.msra.mxu0 0.0
    %1312 = vmatprep.subr.mxu0 0.0
    %1313 = vmatpush1.xpose.msra.mxu0 0.0
    %1314 = vmatprep.subr.mxu0 0.0
    %1315 = vmatpush1.xpose.msra.mxu0 0.0
    %1316 = vmatprep.subr.mxu0 0.0
    %1317 = vmatpush1.xpose.msra.mxu0 0.0
    %1318 = vmatprep.subr.mxu0 0.0
    %1319 = vmatpush1.xpose.msra.mxu0 0.0
    %1320 = vmatprep.mubr.f32.mxu0 0.0
    %1321 = vmatmul.mubr.f32.gmra.mrb[0].mxu0 %v1170
    %v1322 = vpop.f32.mrb[0].mxu0
    %v1323 = vadd.f32 0.0, %v1322
    %v1324 = vpop.f32.mrb[0].mxu0
    %1325 = vdwg.mxu0
    %v1326 = vadd.f32 %v1073, %v1241
    %v1327 = vadd.f32 %v1155, %v1323
    %vm1328 = vcmask 31744
    %v1329 = vsel %vm1328, %v1326, -inf
    %1330 = vmax.xlane.f32.xlu0 %v1329
    %v1331 = vpop.xlane.xlu0 %1330
    %v1332 = vsel %vm1328, %v1327, -inf
    %1333 = vmax.xlane.f32.xlu0 %v1332
    %v1334 = vpop.xlane.xlu0 %1333
    %v1335 = vsub.f32 %v1326, %v1331
    %v1336 = vsub.f32 %v1327, %v1334
    %v1337 = vmul.f32 %v1335, 1.442695
    %v1338 = vpow.pop %v1337
    %v1339 = vmul.f32 %v1336, 1.442695
    %v1340 = vpow.pop %v1339
    %v1341 = vsel %vm1328, %v1338, 0.0
    %1342 = vadd.xlane.f32.xlu0 %v1341
    %v1343 = vpop.xlane.xlu0 %1342
    %v1344 = vsel %vm1328, %v1340, 0.0
    %1345 = vadd.xlane.f32.xlu0 %v1344
    %v1346 = vpop.xlane.xlu0 %1345
    %v1347 = vrcp.pop %v1343
    %v1348 = vrcp.pop %v1346
    %v1349 = vmul.f32 %v1347, 0.5
    %v1350 = vmul.f32 %v1348, 0.5
    %v1351 = vmul.f32 %v1338, %v1349
    %v1352 = vmul.f32 %v1340, %v1350
    %v1354 = vsel %vm1328, %v1351, 0
    %vm1356 = vcmask 1043456
    %v1357 = vsel %vm1356, %v1000, 0
    %1359 = vmatprep.subr.mxu0 0.0
    %1360 = vmatpush1.msra.mxu0 %v1357
    %1361 = vmatprep.subr.mxu0 0.0
    %1362 = vmatpush1.msra.mxu0 0.0
    %1363 = vmatprep.subr.mxu0 0.0
    %1364 = vmatpush1.msra.mxu0 0.0
    %1365 = vmatprep.subr.mxu0 0.0
    %1366 = vmatpush1.msra.mxu0 0.0
    %1367 = vmatprep.subr.mxu0 0.0
    %1368 = vmatpush1.msra.mxu0 0.0
    %1369 = vmatprep.subr.mxu0 0.0
    %1370 = vmatpush1.msra.mxu0 0.0
    %1371 = vmatprep.subr.mxu0 0.0
    %1372 = vmatpush1.msra.mxu0 0.0
    %1373 = vmatprep.subr.mxu0 0.0
    %1374 = vmatpush1.msra.mxu0 0.0
    %1375 = vmatprep.subr.mxu0 0.0
    %1376 = vmatpush1.msra.mxu0 0.0
    %1377 = vmatprep.subr.mxu0 0.0
    %1378 = vmatpush1.msra.mxu0 0.0
    %1379 = vmatprep.subr.mxu0 0.0
    %1380 = vmatpush1.msra.mxu0 0.0
    %1381 = vmatprep.subr.mxu0 0.0
    %1382 = vmatpush1.msra.mxu0 0.0
    %1383 = vmatprep.subr.mxu0 0.0
    %1384 = vmatpush1.msra.mxu0 0.0
    %1385 = vmatprep.subr.mxu0 0.0
    %1386 = vmatpush1.msra.mxu0 0.0
    %1387 = vmatprep.subr.mxu0 0.0
    %1388 = vmatpush1.msra.mxu0 0.0
    %1389 = vmatprep.subr.mxu0 0.0
    %1390 = vmatpush1.msra.mxu0 0.0
    %1391 = vmatprep.subr.mxu0 0.0
    %1392 = vmatpush1.msra.mxu0 0.0
    %1393 = vmatprep.subr.mxu0 0.0
    %1394 = vmatpush1.msra.mxu0 0.0
    %1395 = vmatprep.subr.mxu0 0.0
    %1396 = vmatpush1.msra.mxu0 0.0
    %1397 = vmatprep.subr.mxu0 0.0
    %1398 = vmatpush1.msra.mxu0 0.0
    %1399 = vmatprep.subr.mxu0 0.0
    %1400 = vmatpush1.msra.mxu0 0.0
    %1401 = vmatprep.subr.mxu0 0.0
    %1402 = vmatpush1.msra.mxu0 0.0
    %1403 = vmatprep.subr.mxu0 0.0
    %1404 = vmatpush1.msra.mxu0 0.0
    %1405 = vmatprep.subr.mxu0 0.0
    %1406 = vmatpush1.msra.mxu0 0.0
    %1407 = vmatprep.subr.mxu0 0.0
    %1408 = vmatpush1.msra.mxu0 0.0
    %1409 = vmatprep.subr.mxu0 0.0
    %1410 = vmatpush1.msra.mxu0 0.0
    %1411 = vmatprep.subr.mxu0 0.0
    %1412 = vmatpush1.msra.mxu0 0.0
    %1413 = vmatprep.subr.mxu0 0.0
    %1414 = vmatpush1.msra.mxu0 0.0
    %1415 = vmatprep.subr.mxu0 0.0
    %1416 = vmatpush1.msra.mxu0 0.0
    %1417 = vmatprep.subr.mxu0 0.0
    %1418 = vmatpush1.msra.mxu0 0.0
    %1419 = vmatprep.subr.mxu0 0.0
    %1420 = vmatpush1.msra.mxu0 0.0
    %1421 = vmatprep.subr.mxu0 0.0
    %1422 = vmatpush1.msra.mxu0 0.0
    %1423 = vmatprep.mubr.f32.mxu0 0.0
    %1424 = vmatmul.mubr.f32.gmra.mrb[0].mxu0 %v1354
    %v1425 = vpop.f32.mrb[0].mxu0
    %v1426 = vadd.f32 0.0, %v1425
    %v1427 = vpop.f32.mrb[0].mxu0
    %1428 = vdwg.mxu0
    %v1430 = vsel %vm1328, %v1352, 0
    %v1432 = vsel %vm1356, %v1085, 0
    %1434 = vmatprep.subr.mxu0 0.0
    %1435 = vmatpush1.msra.mxu0 %v1432
    %1436 = vmatprep.subr.mxu0 0.0
    %1437 = vmatpush1.msra.mxu0 0.0
    %1438 = vmatprep.subr.mxu0 0.0
    %1439 = vmatpush1.msra.mxu0 0.0
    %1440 = vmatprep.subr.mxu0 0.0
    %1441 = vmatpush1.msra.mxu0 0.0
    %1442 = vmatprep.subr.mxu0 0.0
    %1443 = vmatpush1.msra.mxu0 0.0
    %1444 = vmatprep.subr.mxu0 0.0
    %1445 = vmatpush1.msra.mxu0 0.0
    %1446 = vmatprep.subr.mxu0 0.0
    %1447 = vmatpush1.msra.mxu0 0.0
    %1448 = vmatprep.subr.mxu0 0.0
    %1449 = vmatpush1.msra.mxu0 0.0
    %1450 = vmatprep.subr.mxu0 0.0
    %1451 = vmatpush1.msra.mxu0 0.0
    %1452 = vmatprep.subr.mxu0 0.0
    %1453 = vmatpush1.msra.mxu0 0.0
    %1454 = vmatprep.subr.mxu0 0.0
    %1455 = vmatpush1.msra.mxu0 0.0
    %1456 = vmatprep.subr.mxu0 0.0
    %1457 = vmatpush1.msra.mxu0 0.0
    %1458 = vmatprep.subr.mxu0 0.0
    %1459 = vmatpush1.msra.mxu0 0.0
    %1460 = vmatprep.subr.mxu0 0.0
    %1461 = vmatpush1.msra.mxu0 0.0
    %1462 = vmatprep.subr.mxu0 0.0
    %1463 = vmatpush1.msra.mxu0 0.0
    %1464 = vmatprep.subr.mxu0 0.0
    %1465 = vmatpush1.msra.mxu0 0.0
    %1466 = vmatprep.subr.mxu0 0.0
    %1467 = vmatpush1.msra.mxu0 0.0
    %1468 = vmatprep.subr.mxu0 0.0
    %1469 = vmatpush1.msra.mxu0 0.0
    %1470 = vmatprep.subr.mxu0 0.0
    %1471 = vmatpush1.msra.mxu0 0.0
    %1472 = vmatprep.subr.mxu0 0.0
    %1473 = vmatpush1.msra.mxu0 0.0
    %1474 = vmatprep.subr.mxu0 0.0
    %1475 = vmatpush1.msra.mxu0 0.0
    %1476 = vmatprep.subr.mxu0 0.0
    %1477 = vmatpush1.msra.mxu0 0.0
    %1478 = vmatprep.subr.mxu0 0.0
    %1479 = vmatpush1.msra.mxu0 0.0
    %1480 = vmatprep.subr.mxu0 0.0
    %1481 = vmatpush1.msra.mxu0 0.0
    %1482 = vmatprep.subr.mxu0 0.0
    %1483 = vmatpush1.msra.mxu0 0.0
    %1484 = vmatprep.subr.mxu0 0.0
    %1485 = vmatpush1.msra.mxu0 0.0
    %1486 = vmatprep.subr.mxu0 0.0
    %1487 = vmatpush1.msra.mxu0 0.0
    %1488 = vmatprep.subr.mxu0 0.0
    %1489 = vmatpush1.msra.mxu0 0.0
    %1490 = vmatprep.subr.mxu0 0.0
    %1491 = vmatpush1.msra.mxu0 0.0
    %1492 = vmatprep.subr.mxu0 0.0
    %1493 = vmatpush1.msra.mxu0 0.0
    %1494 = vmatprep.subr.mxu0 0.0
    %1495 = vmatpush1.msra.mxu0 0.0
    %1496 = vmatprep.subr.mxu0 0.0
    %1497 = vmatpush1.msra.mxu0 0.0
    %1498 = vmatprep.mubr.f32.mxu0 0.0
    %1499 = vmatmul.mubr.f32.gmra.mrb[0].mxu0 %v1430
    %v1500 = vpop.f32.mrb[0].mxu0
    %v1501 = vadd.f32 0.0, %v1500
    %v1502 = vpop.f32.mrb[0].mxu0
    %1503 = vdwg.mxu0
    %v1504 = vld [vmem:[%s3 + $0x8] sm:$0xff]
    %v1505 = vsel %vm1356, %v833, 0
    %1507 = vmatprep.subr.mxu0 0.0
    %1508 = vmatpush1.msra.mxu0 %v1505
    %1509 = vmatprep.subr.mxu0 0.0
    %1510 = vmatpush1.msra.mxu0 0.0
    %1511 = vmatprep.subr.mxu0 0.0
    %1512 = vmatpush1.msra.mxu0 0.0
    %1513 = vmatprep.subr.mxu0 0.0
    %1514 = vmatpush1.msra.mxu0 0.0
    %1515 = vmatprep.subr.mxu0 0.0
    %1516 = vmatpush1.msra.mxu0 0.0
    %1517 = vmatprep.subr.mxu0 0.0
    %1518 = vmatpush1.msra.mxu0 0.0
    %1519 = vmatprep.subr.mxu0 0.0
    %1520 = vmatpush1.msra.mxu0 0.0
    %1521 = vmatprep.subr.mxu0 0.0
    %1522 = vmatpush1.msra.mxu0 0.0
    %1523 = vmatprep.subr.mxu0 0.0
    %1524 = vmatpush1.msra.mxu0 0.0
    %1525 = vmatprep.subr.mxu0 0.0
    %1526 = vmatpush1.msra.mxu0 0.0
    %1527 = vmatprep.subr.mxu0 0.0
    %1528 = vmatpush1.msra.mxu0 0.0
    %1529 = vmatprep.subr.mxu0 0.0
    %1530 = vmatpush1.msra.mxu0 0.0
    %1531 = vmatprep.subr.mxu0 0.0
    %1532 = vmatpush1.msra.mxu0 0.0
    %1533 = vmatprep.subr.mxu0 0.0
    %1534 = vmatpush1.msra.mxu0 0.0
    %1535 = vmatprep.subr.mxu0 0.0
    %1536 = vmatpush1.msra.mxu0 0.0
    %1537 = vmatprep.subr.mxu0 0.0
    %1538 = vmatpush1.msra.mxu0 0.0
    %1539 = vmatprep.subr.mxu0 0.0
    %1540 = vmatpush1.msra.mxu0 0.0
    %1541 = vmatprep.subr.mxu0 0.0
    %1542 = vmatpush1.msra.mxu0 0.0
    %1543 = vmatprep.subr.mxu0 0.0
    %1544 = vmatpush1.msra.mxu0 0.0
    %1545 = vmatprep.subr.mxu0 0.0
    %1546 = vmatpush1.msra.mxu0 0.0
    %1547 = vmatprep.subr.mxu0 0.0
    %1548 = vmatpush1.msra.mxu0 0.0
    %1549 = vmatprep.subr.mxu0 0.0
    %1550 = vmatpush1.msra.mxu0 0.0
    %1551 = vmatprep.subr.mxu0 0.0
    %1552 = vmatpush1.msra.mxu0 0.0
    %1553 = vmatprep.subr.mxu0 0.0
    %1554 = vmatpush1.msra.mxu0 0.0
    %1555 = vmatprep.subr.mxu0 0.0
    %1556 = vmatpush1.msra.mxu0 0.0
    %1557 = vmatprep.subr.mxu0 0.0
    %1558 = vmatpush1.msra.mxu0 0.0
    %1559 = vmatprep.subr.mxu0 0.0
    %1560 = vmatpush1.msra.mxu0 0.0
    %1561 = vmatprep.subr.mxu0 0.0
    %1562 = vmatpush1.msra.mxu0 0.0
    %1563 = vmatprep.subr.mxu0 0.0
    %1564 = vmatpush1.msra.mxu0 0.0
    %1565 = vmatprep.subr.mxu0 0.0
    %1566 = vmatpush1.msra.mxu0 0.0
    %1567 = vmatprep.subr.mxu0 0.0
    %1568 = vmatpush1.msra.mxu0 0.0
    %1569 = vmatprep.subr.mxu0 0.0
    %1570 = vmatpush1.msra.mxu0 0.0
    %1571 = vmatprep.mubr.f32.mxu0 0.0
    %1572 = vmatmul.mubr.f32.gmra.mrb[0].mxu0 %v1354
    %v1573 = vpop.f32.mrb[0].mxu0
    %v1574 = vadd.f32 0.0, %v1573
    %v1575 = vpop.f32.mrb[0].mxu0
    %1576 = vdwg.mxu0
    %v1577 = vsel %vm1356, %v918, 0
    %1579 = vmatprep.subr.mxu0 0.0
    %1580 = vmatpush1.msra.mxu0 %v1577
    %1581 = vmatprep.subr.mxu0 0.0
    %1582 = vmatpush1.msra.mxu0 0.0
    %1583 = vmatprep.subr.mxu0 0.0
    %1584 = vmatpush1.msra.mxu0 0.0
    %1585 = vmatprep.subr.mxu0 0.0
    %1586 = vmatpush1.msra.mxu0 0.0
    %1587 = vmatprep.subr.mxu0 0.0
    %1588 = vmatpush1.msra.mxu0 0.0
    %1589 = vmatprep.subr.mxu0 0.0
    %1590 = vmatpush1.msra.mxu0 0.0
    %1591 = vmatprep.subr.mxu0 0.0
    %1592 = vmatpush1.msra.mxu0 0.0
    %1593 = vmatprep.subr.mxu0 0.0
    %1594 = vmatpush1.msra.mxu0 0.0
    %1595 = vmatprep.subr.mxu0 0.0
    %1596 = vmatpush1.msra.mxu0 0.0
    %1597 = vmatprep.subr.mxu0 0.0
    %1598 = vmatpush1.msra.mxu0 0.0
    %1599 = vmatprep.subr.mxu0 0.0
    %1600 = vmatpush1.msra.mxu0 0.0
    %1601 = vmatprep.subr.mxu0 0.0
    %1602 = vmatpush1.msra.mxu0 0.0
    %1603 = vmatprep.subr.mxu0 0.0
    %1604 = vmatpush1.msra.mxu0 0.0
    %1605 = vmatprep.subr.mxu0 0.0
    %1606 = vmatpush1.msra.mxu0 0.0
    %1607 = vmatprep.subr.mxu0 0.0
    %1608 = vmatpush1.msra.mxu0 0.0
    %1609 = vmatprep.subr.mxu0 0.0
    %1610 = vmatpush1.msra.mxu0 0.0
    %1611 = vmatprep.subr.mxu0 0.0
    %1612 = vmatpush1.msra.mxu0 0.0
    %1613 = vmatprep.subr.mxu0 0.0
    %1614 = vmatpush1.msra.mxu0 0.0
    %1615 = vmatprep.subr.mxu0 0.0
    %1616 = vmatpush1.msra.mxu0 0.0
    %1617 = vmatprep.subr.mxu0 0.0
    %1618 = vmatpush1.msra.mxu0 0.0
    %1619 = vmatprep.subr.mxu0 0.0
    %1620 = vmatpush1.msra.mxu0 0.0
    %1621 = vmatprep.subr.mxu0 0.0
    %1622 = vmatpush1.msra.mxu0 0.0
    %1623 = vmatprep.subr.mxu0 0.0
    %1624 = vmatpush1.msra.mxu0 0.0
    %1625 = vmatprep.subr.mxu0 0.0
    %1626 = vmatpush1.msra.mxu0 0.0
    %1627 = vmatprep.subr.mxu0 0.0
    %1628 = vmatpush1.msra.mxu0 0.0
    %1629 = vmatprep.subr.mxu0 0.0
    %1630 = vmatpush1.msra.mxu0 0.0
    %1631 = vmatprep.subr.mxu0 0.0
    %1632 = vmatpush1.msra.mxu0 0.0
    %1633 = vmatprep.subr.mxu0 0.0
    %1634 = vmatpush1.msra.mxu0 0.0
    %1635 = vmatprep.subr.mxu0 0.0
    %1636 = vmatpush1.msra.mxu0 0.0
    %1637 = vmatprep.subr.mxu0 0.0
    %1638 = vmatpush1.msra.mxu0 0.0
    %1639 = vmatprep.subr.mxu0 0.0
    %1640 = vmatpush1.msra.mxu0 0.0
    %1641 = vmatprep.subr.mxu0 0.0
    %1642 = vmatpush1.msra.mxu0 0.0
    %1643 = vmatprep.mubr.f32.mxu0 0.0
    %1644 = vmatmul.mubr.f32.gmra.mrb[0].mxu0 %v1430
    %v1645 = vpop.f32.mrb[0].mxu0
    %v1646 = vadd.f32 0.0, %v1645
    %v1647 = vpop.f32.mrb[0].mxu0
    %1648 = vdwg.mxu0
    %v1649 = vld [vmem:[%s679 + $0x8] sm:$0xff]
    %v1651 = vsel %vm505, %v1574, 0
    %v1654 = vsel %vm505, %v1649, 0
    %1656 = vmatprep.subr.mxu0 0.0
    %1657 = vmatpush1.xpose.msra.mxu0 %v1654
    %1658 = vmatprep.subr.mxu0 0.0
    %1659 = vmatpush1.xpose.msra.mxu0 0.0
    %1660 = vmatprep.subr.mxu0 0.0
    %1661 = vmatpush1.xpose.msra.mxu0 0.0
    %1662 = vmatprep.subr.mxu0 0.0
    %1663 = vmatpush1.xpose.msra.mxu0 0.0
    %1664 = vmatprep.subr.mxu0 0.0
    %1665 = vmatpush1.xpose.msra.mxu0 0.0
    %1666 = vmatprep.subr.mxu0 0.0
    %1667 = vmatpush1.xpose.msra.mxu0 0.0
    %1668 = vmatprep.subr.mxu0 0.0
    %1669 = vmatpush1.xpose.msra.mxu0 0.0
    %1670 = vmatprep.subr.mxu0 0.0
    %1671 = vmatpush1.xpose.msra.mxu0 0.0
    %1672 = vmatprep.subr.mxu0 0.0
    %1673 = vmatpush1.xpose.msra.mxu0 0.0
    %1674 = vmatprep.subr.mxu0 0.0
    %1675 = vmatpush1.xpose.msra.mxu0 0.0
    %1676 = vmatprep.subr.mxu0 0.0
    %1677 = vmatpush1.xpose.msra.mxu0 0.0
    %1678 = vmatprep.subr.mxu0 0.0
    %1679 = vmatpush1.xpose.msra.mxu0 0.0
    %1680 = vmatprep.subr.mxu0 0.0
    %1681 = vmatpush1.xpose.msra.mxu0 0.0
    %1682 = vmatprep.subr.mxu0 0.0
    %1683 = vmatpush1.xpose.msra.mxu0 0.0
    %1684 = vmatprep.subr.mxu0 0.0
    %1685 = vmatpush1.xpose.msra.mxu0 0.0
    %1686 = vmatprep.subr.mxu0 0.0
    %1687 = vmatpush1.xpose.msra.mxu0 0.0
    %1688 = vmatprep.subr.mxu0 0.0
    %1689 = vmatpush1.xpose.msra.mxu0 0.0
    %1690 = vmatprep.subr.mxu0 0.0
    %1691 = vmatpush1.xpose.msra.mxu0 0.0
    %1692 = vmatprep.subr.mxu0 0.0
    %1693 = vmatpush1.xpose.msra.mxu0 0.0
    %1694 = vmatprep.subr.mxu0 0.0
    %1695 = vmatpush1.xpose.msra.mxu0 0.0
    %1696 = vmatprep.subr.mxu0 0.0
    %1697 = vmatpush1.xpose.msra.mxu0 0.0
    %1698 = vmatprep.subr.mxu0 0.0
    %1699 = vmatpush1.xpose.msra.mxu0 0.0
    %1700 = vmatprep.subr.mxu0 0.0
    %1701 = vmatpush1.xpose.msra.mxu0 0.0
    %1702 = vmatprep.subr.mxu0 0.0
    %1703 = vmatpush1.xpose.msra.mxu0 0.0
    %1704 = vmatprep.subr.mxu0 0.0
    %1705 = vmatpush1.xpose.msra.mxu0 0.0
    %1706 = vmatprep.subr.mxu0 0.0
    %1707 = vmatpush1.xpose.msra.mxu0 0.0
    %1708 = vmatprep.subr.mxu0 0.0
    %1709 = vmatpush1.xpose.msra.mxu0 0.0
    %1710 = vmatprep.subr.mxu0 0.0
    %1711 = vmatpush1.xpose.msra.mxu0 0.0
    %1712 = vmatprep.subr.mxu0 0.0
    %1713 = vmatpush1.xpose.msra.mxu0 0.0
    %1714 = vmatprep.subr.mxu0 0.0
    %1715 = vmatpush1.xpose.msra.mxu0 0.0
    %1716 = vmatprep.subr.mxu0 0.0
    %1717 = vmatpush1.xpose.msra.mxu0 0.0
    %1718 = vmatprep.subr.mxu0 0.0
    %1719 = vmatpush1.xpose.msra.mxu0 0.0
    %1720 = vmatprep.mubr.f32.mxu0 0.0
    %1721 = vmatmul.mubr.f32.gmra.mrb[0].mxu0 %v1651
    %v1722 = vpop.f32.mrb[0].mxu0
    %v1723 = vadd.f32 0.0, %v1722
    %v1724 = vpop.f32.mrb[0].mxu0
    %1725 = vdwg.mxu0
    %v1727 = vsel %vm505, %v1646, 0
    %1729 = vmatprep.subr.mxu0 0.0
    %1730 = vmatpush1.xpose.msra.mxu0 %v1654
    %1731 = vmatprep.subr.mxu0 0.0
    %1732 = vmatpush1.xpose.msra.mxu0 0.0
    %1733 = vmatprep.subr.mxu0 0.0
    %1734 = vmatpush1.xpose.msra.mxu0 0.0
    %1735 = vmatprep.subr.mxu0 0.0
    %1736 = vmatpush1.xpose.msra.mxu0 0.0
    %1737 = vmatprep.subr.mxu0 0.0
    %1738 = vmatpush1.xpose.msra.mxu0 0.0
    %1739 = vmatprep.subr.mxu0 0.0
    %1740 = vmatpush1.xpose.msra.mxu0 0.0
    %1741 = vmatprep.subr.mxu0 0.0
    %1742 = vmatpush1.xpose.msra.mxu0 0.0
    %1743 = vmatprep.subr.mxu0 0.0
    %1744 = vmatpush1.xpose.msra.mxu0 0.0
    %1745 = vmatprep.subr.mxu0 0.0
    %1746 = vmatpush1.xpose.msra.mxu0 0.0
    %1747 = vmatprep.subr.mxu0 0.0
    %1748 = vmatpush1.xpose.msra.mxu0 0.0
    %1749 = vmatprep.subr.mxu0 0.0
    %1750 = vmatpush1.xpose.msra.mxu0 0.0
    %1751 = vmatprep.subr.mxu0 0.0
    %1752 = vmatpush1.xpose.msra.mxu0 0.0
    %1753 = vmatprep.subr.mxu0 0.0
    %1754 = vmatpush1.xpose.msra.mxu0 0.0
    %1755 = vmatprep.subr.mxu0 0.0
    %1756 = vmatpush1.xpose.msra.mxu0 0.0
    %1757 = vmatprep.subr.mxu0 0.0
    %1758 = vmatpush1.xpose.msra.mxu0 0.0
    %1759 = vmatprep.subr.mxu0 0.0
    %1760 = vmatpush1.xpose.msra.mxu0 0.0
    %1761 = vmatprep.subr.mxu0 0.0
    %1762 = vmatpush1.xpose.msra.mxu0 0.0
    %1763 = vmatprep.subr.mxu0 0.0
    %1764 = vmatpush1.xpose.msra.mxu0 0.0
    %1765 = vmatprep.subr.mxu0 0.0
    %1766 = vmatpush1.xpose.msra.mxu0 0.0
    %1767 = vmatprep.subr.mxu0 0.0
    %1768 = vmatpush1.xpose.msra.mxu0 0.0
    %1769 = vmatprep.subr.mxu0 0.0
    %1770 = vmatpush1.xpose.msra.mxu0 0.0
    %1771 = vmatprep.subr.mxu0 0.0
    %1772 = vmatpush1.xpose.msra.mxu0 0.0
    %1773 = vmatprep.subr.mxu0 0.0
    %1774 = vmatpush1.xpose.msra.mxu0 0.0
    %1775 = vmatprep.subr.mxu0 0.0
    %1776 = vmatpush1.xpose.msra.mxu0 0.0
    %1777 = vmatprep.subr.mxu0 0.0
    %1778 = vmatpush1.xpose.msra.mxu0 0.0
    %1779 = vmatprep.subr.mxu0 0.0
    %1780 = vmatpush1.xpose.msra.mxu0 0.0
    %1781 = vmatprep.subr.mxu0 0.0
    %1782 = vmatpush1.xpose.msra.mxu0 0.0
    %1783 = vmatprep.subr.mxu0 0.0
    %1784 = vmatpush1.xpose.msra.mxu0 0.0
    %1785 = vmatprep.subr.mxu0 0.0
    %1786 = vmatpush1.xpose.msra.mxu0 0.0
    %1787 = vmatprep.subr.mxu0 0.0
    %1788 = vmatpush1.xpose.msra.mxu0 0.0
    %1789 = vmatprep.subr.mxu0 0.0
    %1790 = vmatpush1.xpose.msra.mxu0 0.0
    %1791 = vmatprep.subr.mxu0 0.0
    %1792 = vmatpush1.xpose.msra.mxu0 0.0
    %1793 = vmatprep.mubr.f32.mxu0 0.0
    %1794 = vmatmul.mubr.f32.gmra.mrb[0].mxu0 %v1727
    %v1795 = vpop.f32.mrb[0].mxu0
    %v1796 = vadd.f32 0.0, %v1795
    %v1797 = vpop.f32.mrb[0].mxu0
    %1798 = vdwg.mxu0
    %v1800 = vsel %vm505, %v1426, 0
    %v1803 = vsel %vm505, %v1504, 0
    %1805 = vmatprep.subr.mxu0 0.0
    %1806 = vmatpush1.xpose.msra.mxu0 %v1803
    %1807 = vmatprep.subr.mxu0 0.0
    %1808 = vmatpush1.xpose.msra.mxu0 0.0
    %1809 = vmatprep.subr.mxu0 0.0
    %1810 = vmatpush1.xpose.msra.mxu0 0.0
    %1811 = vmatprep.subr.mxu0 0.0
    %1812 = vmatpush1.xpose.msra.mxu0 0.0
    %1813 = vmatprep.subr.mxu0 0.0
    %1814 = vmatpush1.xpose.msra.mxu0 0.0
    %1815 = vmatprep.subr.mxu0 0.0
    %1816 = vmatpush1.xpose.msra.mxu0 0.0
    %1817 = vmatprep.subr.mxu0 0.0
    %1818 = vmatpush1.xpose.msra.mxu0 0.0
    %1819 = vmatprep.subr.mxu0 0.0
    %1820 = vmatpush1.xpose.msra.mxu0 0.0
    %1821 = vmatprep.subr.mxu0 0.0
    %1822 = vmatpush1.xpose.msra.mxu0 0.0
    %1823 = vmatprep.subr.mxu0 0.0
    %1824 = vmatpush1.xpose.msra.mxu0 0.0
    %1825 = vmatprep.subr.mxu0 0.0
    %1826 = vmatpush1.xpose.msra.mxu0 0.0
    %1827 = vmatprep.subr.mxu0 0.0
    %1828 = vmatpush1.xpose.msra.mxu0 0.0
    %1829 = vmatprep.subr.mxu0 0.0
    %1830 = vmatpush1.xpose.msra.mxu0 0.0
    %1831 = vmatprep.subr.mxu0 0.0
    %1832 = vmatpush1.xpose.msra.mxu0 0.0
    %1833 = vmatprep.subr.mxu0 0.0
    %1834 = vmatpush1.xpose.msra.mxu0 0.0
    %1835 = vmatprep.subr.mxu0 0.0
    %1836 = vmatpush1.xpose.msra.mxu0 0.0
    %1837 = vmatprep.subr.mxu0 0.0
    %1838 = vmatpush1.xpose.msra.mxu0 0.0
    %1839 = vmatprep.subr.mxu0 0.0
    %1840 = vmatpush1.xpose.msra.mxu0 0.0
    %1841 = vmatprep.subr.mxu0 0.0
    %1842 = vmatpush1.xpose.msra.mxu0 0.0
    %1843 = vmatprep.subr.mxu0 0.0
    %1844 = vmatpush1.xpose.msra.mxu0 0.0
    %1845 = vmatprep.subr.mxu0 0.0
    %1846 = vmatpush1.xpose.msra.mxu0 0.0
    %1847 = vmatprep.subr.mxu0 0.0
    %1848 = vmatpush1.xpose.msra.mxu0 0.0
    %1849 = vmatprep.subr.mxu0 0.0
    %1850 = vmatpush1.xpose.msra.mxu0 0.0
    %1851 = vmatprep.subr.mxu0 0.0
    %1852 = vmatpush1.xpose.msra.mxu0 0.0
    %1853 = vmatprep.subr.mxu0 0.0
    %1854 = vmatpush1.xpose.msra.mxu0 0.0
    %1855 = vmatprep.subr.mxu0 0.0
    %1856 = vmatpush1.xpose.msra.mxu0 0.0
    %1857 = vmatprep.subr.mxu0 0.0
    %1858 = vmatpush1.xpose.msra.mxu0 0.0
    %1859 = vmatprep.subr.mxu0 0.0
    %1860 = vmatpush1.xpose.msra.mxu0 0.0
    %1861 = vmatprep.subr.mxu0 0.0
    %1862 = vmatpush1.xpose.msra.mxu0 0.0
    %1863 = vmatprep.subr.mxu0 0.0
    %1864 = vmatpush1.xpose.msra.mxu0 0.0
    %1865 = vmatprep.subr.mxu0 0.0
    %1866 = vmatpush1.xpose.msra.mxu0 0.0
    %1867 = vmatprep.subr.mxu0 0.0
    %1868 = vmatpush1.xpose.msra.mxu0 0.0
    %1869 = vmatprep.mubr.f32.mxu0 0.0
    %1870 = vmatmul.mubr.f32.gmra.mrb[0].mxu0 %v1800
    %v1871 = vpop.f32.mrb[0].mxu0
    %v1872 = vadd.f32 %v1723, %v1871
    %v1873 = vpop.f32.mrb[0].mxu0
    %1874 = vdwg.mxu0
    %v1876 = vsel %vm505, %v1501, 0
    %1878 = vmatprep.subr.mxu0 0.0
    %1879 = vmatpush1.xpose.msra.mxu0 %v1803
    %1880 = vmatprep.subr.mxu0 0.0
    %1881 = vmatpush1.xpose.msra.mxu0 0.0
    %1882 = vmatprep.subr.mxu0 0.0
    %1883 = vmatpush1.xpose.msra.mxu0 0.0
    %1884 = vmatprep.subr.mxu0 0.0
    %1885 = vmatpush1.xpose.msra.mxu0 0.0
    %1886 = vmatprep.subr.mxu0 0.0
    %1887 = vmatpush1.xpose.msra.mxu0 0.0
    %1888 = vmatprep.subr.mxu0 0.0
    %1889 = vmatpush1.xpose.msra.mxu0 0.0
    %1890 = vmatprep.subr.mxu0 0.0
    %1891 = vmatpush1.xpose.msra.mxu0 0.0
    %1892 = vmatprep.subr.mxu0 0.0
    %1893 = vmatpush1.xpose.msra.mxu0 0.0
    %1894 = vmatprep.subr.mxu0 0.0
    %1895 = vmatpush1.xpose.msra.mxu0 0.0
    %1896 = vmatprep.subr.mxu0 0.0
    %1897 = vmatpush1.xpose.msra.mxu0 0.0
    %1898 = vmatprep.subr.mxu0 0.0
    %1899 = vmatpush1.xpose.msra.mxu0 0.0
    %1900 = vmatprep.subr.mxu0 0.0
    %1901 = vmatpush1.xpose.msra.mxu0 0.0
    %1902 = vmatprep.subr.mxu0 0.0
    %1903 = vmatpush1.xpose.msra.mxu0 0.0
    %1904 = vmatprep.subr.mxu0 0.0
    %1905 = vmatpush1.xpose.msra.mxu0 0.0
    %1906 = vmatprep.subr.mxu0 0.0
    %1907 = vmatpush1.xpose.msra.mxu0 0.0
    %1908 = vmatprep.subr.mxu0 0.0
    %1909 = vmatpush1.xpose.msra.mxu0 0.0
    %1910 = vmatprep.subr.mxu0 0.0
    %1911 = vmatpush1.xpose.msra.mxu0 0.0
    %1912 = vmatprep.subr.mxu0 0.0
    %1913 = vmatpush1.xpose.msra.mxu0 0.0
    %1914 = vmatprep.subr.mxu0 0.0
    %1915 = vmatpush1.xpose.msra.mxu0 0.0
    %1916 = vmatprep.subr.mxu0 0.0
    %1917 = vmatpush1.xpose.msra.mxu0 0.0
    %1918 = vmatprep.subr.mxu0 0.0
    %1919 = vmatpush1.xpose.msra.mxu0 0.0
    %1920 = vmatprep.subr.mxu0 0.0
    %1921 = vmatpush1.xpose.msra.mxu0 0.0
    %1922 = vmatprep.subr.mxu0 0.0
    %1923 = vmatpush1.xpose.msra.mxu0 0.0
    %1924 = vmatprep.subr.mxu0 0.0
    %1925 = vmatpush1.xpose.msra.mxu0 0.0
    %1926 = vmatprep.subr.mxu0 0.0
    %1927 = vmatpush1.xpose.msra.mxu0 0.0
    %1928 = vmatprep.subr.mxu0 0.0
    %1929 = vmatpush1.xpose.msra.mxu0 0.0
    %1930 = vmatprep.subr.mxu0 0.0
    %1931 = vmatpush1.xpose.msra.mxu0 0.0
    %1932 = vmatprep.subr.mxu0 0.0
    %1933 = vmatpush1.xpose.msra.mxu0 0.0
    %1934 = vmatprep.subr.mxu0 0.0
    %1935 = vmatpush1.xpose.msra.mxu0 0.0
    %1936 = vmatprep.subr.mxu0 0.0
    %1937 = vmatpush1.xpose.msra.mxu0 0.0
    %1938 = vmatprep.subr.mxu0 0.0
    %1939 = vmatpush1.xpose.msra.mxu0 0.0
    %1940 = vmatprep.subr.mxu0 0.0
    %1941 = vmatpush1.xpose.msra.mxu0 0.0
    %1942 = vmatprep.mubr.f32.mxu0 0.0
    %1943 = vmatmul.mubr.f32.gmra.mrb[0].mxu0 %v1876
    %v1944 = vpop.f32.mrb[0].mxu0
    %v1945 = vadd.f32 %v1796, %v1944
    %v1946 = vpop.f32.mrb[0].mxu0
    %1947 = vdwg.mxu0
    %v1948 = vsel %vm1356, %v1168, 0
    %1950 = vmatprep.subr.mxu0 0.0
    %1951 = vmatpush1.msra.mxu0 %v1948
    %1952 = vmatprep.subr.mxu0 0.0
    %1953 = vmatpush1.msra.mxu0 0.0
    %1954 = vmatprep.subr.mxu0 0.0
    %1955 = vmatpush1.msra.mxu0 0.0
    %1956 = vmatprep.subr.mxu0 0.0
    %1957 = vmatpush1.msra.mxu0 0.0
    %1958 = vmatprep.subr.mxu0 0.0
    %1959 = vmatpush1.msra.mxu0 0.0
    %1960 = vmatprep.subr.mxu0 0.0
    %1961 = vmatpush1.msra.mxu0 0.0
    %1962 = vmatprep.subr.mxu0 0.0
    %1963 = vmatpush1.msra.mxu0 0.0
    %1964 = vmatprep.subr.mxu0 0.0
    %1965 = vmatpush1.msra.mxu0 0.0
    %1966 = vmatprep.subr.mxu0 0.0
    %1967 = vmatpush1.msra.mxu0 0.0
    %1968 = vmatprep.subr.mxu0 0.0
    %1969 = vmatpush1.msra.mxu0 0.0
    %1970 = vmatprep.subr.mxu0 0.0
    %1971 = vmatpush1.msra.mxu0 0.0
    %1972 = vmatprep.subr.mxu0 0.0
    %1973 = vmatpush1.msra.mxu0 0.0
    %1974 = vmatprep.subr.mxu0 0.0
    %1975 = vmatpush1.msra.mxu0 0.0
    %1976 = vmatprep.subr.mxu0 0.0
    %1977 = vmatpush1.msra.mxu0 0.0
    %1978 = vmatprep.subr.mxu0 0.0
    %1979 = vmatpush1.msra.mxu0 0.0
    %1980 = vmatprep.subr.mxu0 0.0
    %1981 = vmatpush1.msra.mxu0 0.0
    %1982 = vmatprep.subr.mxu0 0.0
    %1983 = vmatpush1.msra.mxu0 0.0
    %1984 = vmatprep.subr.mxu0 0.0
    %1985 = vmatpush1.msra.mxu0 0.0
    %1986 = vmatprep.subr.mxu0 0.0
    %1987 = vmatpush1.msra.mxu0 0.0
    %1988 = vmatprep.subr.mxu0 0.0
    %1989 = vmatpush1.msra.mxu0 0.0
    %1990 = vmatprep.subr.mxu0 0.0
    %1991 = vmatpush1.msra.mxu0 0.0
    %1992 = vmatprep.subr.mxu0 0.0
    %1993 = vmatpush1.msra.mxu0 0.0
    %1994 = vmatprep.subr.mxu0 0.0
    %1995 = vmatpush1.msra.mxu0 0.0
    %1996 = vmatprep.subr.mxu0 0.0
    %1997 = vmatpush1.msra.mxu0 0.0
    %1998 = vmatprep.subr.mxu0 0.0
    %1999 = vmatpush1.msra.mxu0 0.0
    %2000 = vmatprep.subr.mxu0 0.0
    %2001 = vmatpush1.msra.mxu0 0.0
    %2002 = vmatprep.subr.mxu0 0.0
    %2003 = vmatpush1.msra.mxu0 0.0
    %2004 = vmatprep.subr.mxu0 0.0
    %2005 = vmatpush1.msra.mxu0 0.0
    %2006 = vmatprep.subr.mxu0 0.0
    %2007 = vmatpush1.msra.mxu0 0.0
    %2008 = vmatprep.subr.mxu0 0.0
    %2009 = vmatpush1.msra.mxu0 0.0
    %2010 = vmatprep.subr.mxu0 0.0
    %2011 = vmatpush1.msra.mxu0 0.0
    %2012 = vmatprep.subr.mxu0 0.0
    %2013 = vmatpush1.msra.mxu0 0.0
    %2014 = vmatprep.mubr.f32.mxu0 0.0
    %2015 = vmatmul.mubr.f32.gmra.mrb[0].mxu0 %v1354
    %v2016 = vpop.f32.mrb[0].mxu0
    %v2017 = vadd.f32 0.0, %v2016
    %v2018 = vpop.f32.mrb[0].mxu0
    %2019 = vdwg.mxu0
    %v2020 = vsel %vm1356, %v1253, 0
    %2022 = vmatprep.subr.mxu0 0.0
    %2023 = vmatpush1.msra.mxu0 %v2020
    %2024 = vmatprep.subr.mxu0 0.0
    %2025 = vmatpush1.msra.mxu0 0.0
    %2026 = vmatprep.subr.mxu0 0.0
    %2027 = vmatpush1.msra.mxu0 0.0
    %2028 = vmatprep.subr.mxu0 0.0
    %2029 = vmatpush1.msra.mxu0 0.0
    %2030 = vmatprep.subr.mxu0 0.0
    %2031 = vmatpush1.msra.mxu0 0.0
    %2032 = vmatprep.subr.mxu0 0.0
    %2033 = vmatpush1.msra.mxu0 0.0
    %2034 = vmatprep.subr.mxu0 0.0
    %2035 = vmatpush1.msra.mxu0 0.0
    %2036 = vmatprep.subr.mxu0 0.0
    %2037 = vmatpush1.msra.mxu0 0.0
    %2038 = vmatprep.subr.mxu0 0.0
    %2039 = vmatpush1.msra.mxu0 0.0
    %2040 = vmatprep.subr.mxu0 0.0
    %2041 = vmatpush1.msra.mxu0 0.0
    %2042 = vmatprep.subr.mxu0 0.0
    %2043 = vmatpush1.msra.mxu0 0.0
    %2044 = vmatprep.subr.mxu0 0.0
    %2045 = vmatpush1.msra.mxu0 0.0
    %2046 = vmatprep.subr.mxu0 0.0
    %2047 = vmatpush1.msra.mxu0 0.0
    %2048 = vmatprep.subr.mxu0 0.0
    %2049 = vmatpush1.msra.mxu0 0.0
    %2050 = vmatprep.subr.mxu0 0.0
    %2051 = vmatpush1.msra.mxu0 0.0
    %2052 = vmatprep.subr.mxu0 0.0
    %2053 = vmatpush1.msra.mxu0 0.0
    %2054 = vmatprep.subr.mxu0 0.0
    %2055 = vmatpush1.msra.mxu0 0.0
    %2056 = vmatprep.subr.mxu0 0.0
    %2057 = vmatpush1.msra.mxu0 0.0
    %2058 = vmatprep.subr.mxu0 0.0
    %2059 = vmatpush1.msra.mxu0 0.0
    %2060 = vmatprep.subr.mxu0 0.0
    %2061 = vmatpush1.msra.mxu0 0.0
    %2062 = vmatprep.subr.mxu0 0.0
    %2063 = vmatpush1.msra.mxu0 0.0
    %2064 = vmatprep.subr.mxu0 0.0
    %2065 = vmatpush1.msra.mxu0 0.0
    %2066 = vmatprep.subr.mxu0 0.0
    %2067 = vmatpush1.msra.mxu0 0.0
    %2068 = vmatprep.subr.mxu0 0.0
    %2069 = vmatpush1.msra.mxu0 0.0
    %2070 = vmatprep.subr.mxu0 0.0
    %2071 = vmatpush1.msra.mxu0 0.0
    %2072 = vmatprep.subr.mxu0 0.0
    %2073 = vmatpush1.msra.mxu0 0.0
    %2074 = vmatprep.subr.mxu0 0.0
    %2075 = vmatpush1.msra.mxu0 0.0
    %2076 = vmatprep.subr.mxu0 0.0
    %2077 = vmatpush1.msra.mxu0 0.0
    %2078 = vmatprep.subr.mxu0 0.0
    %2079 = vmatpush1.msra.mxu0 0.0
    %2080 = vmatprep.subr.mxu0 0.0
    %2081 = vmatpush1.msra.mxu0 0.0
    %2082 = vmatprep.subr.mxu0 0.0
    %2083 = vmatpush1.msra.mxu0 0.0
    %2084 = vmatprep.subr.mxu0 0.0
    %2085 = vmatpush1.msra.mxu0 0.0
    %2086 = vmatprep.mubr.f32.mxu0 0.0
    %2087 = vmatmul.mubr.f32.gmra.mrb[0].mxu0 %v1430
    %v2088 = vpop.f32.mrb[0].mxu0
    %v2089 = vadd.f32 0.0, %v2088
    %v2090 = vpop.f32.mrb[0].mxu0
    %2091 = vdwg.mxu0
    %v2092 = vld [vmem:[%s797 + $0x8] sm:$0xff]
    %v2094 = vsel %vm505, %v2017, 0
    %v2097 = vsel %vm505, %v2092, 0
    %2099 = vmatprep.subr.mxu0 0.0
    %2100 = vmatpush1.xpose.msra.mxu0 %v2097
    %2101 = vmatprep.subr.mxu0 0.0
    %2102 = vmatpush1.xpose.msra.mxu0 0.0
    %2103 = vmatprep.subr.mxu0 0.0
    %2104 = vmatpush1.xpose.msra.mxu0 0.0
    %2105 = vmatprep.subr.mxu0 0.0
    %2106 = vmatpush1.xpose.msra.mxu0 0.0
    %2107 = vmatprep.subr.mxu0 0.0
    %2108 = vmatpush1.xpose.msra.mxu0 0.0
    %2109 = vmatprep.subr.mxu0 0.0
    %2110 = vmatpush1.xpose.msra.mxu0 0.0
    %2111 = vmatprep.subr.mxu0 0.0
    %2112 = vmatpush1.xpose.msra.mxu0 0.0
    %2113 = vmatprep.subr.mxu0 0.0
    %2114 = vmatpush1.xpose.msra.mxu0 0.0
    %2115 = vmatprep.subr.mxu0 0.0
    %2116 = vmatpush1.xpose.msra.mxu0 0.0
    %2117 = vmatprep.subr.mxu0 0.0
    %2118 = vmatpush1.xpose.msra.mxu0 0.0
    %2119 = vmatprep.subr.mxu0 0.0
    %2120 = vmatpush1.xpose.msra.mxu0 0.0
    %2121 = vmatprep.subr.mxu0 0.0
    %2122 = vmatpush1.xpose.msra.mxu0 0.0
    %2123 = vmatprep.subr.mxu0 0.0
    %2124 = vmatpush1.xpose.msra.mxu0 0.0
    %2125 = vmatprep.subr.mxu0 0.0
    %2126 = vmatpush1.xpose.msra.mxu0 0.0
    %2127 = vmatprep.subr.mxu0 0.0
    %2128 = vmatpush1.xpose.msra.mxu0 0.0
    %2129 = vmatprep.subr.mxu0 0.0
    %2130 = vmatpush1.xpose.msra.mxu0 0.0
    %2131 = vmatprep.subr.mxu0 0.0
    %2132 = vmatpush1.xpose.msra.mxu0 0.0
    %2133 = vmatprep.subr.mxu0 0.0
    %2134 = vmatpush1.xpose.msra.mxu0 0.0
    %2135 = vmatprep.subr.mxu0 0.0
    %2136 = vmatpush1.xpose.msra.mxu0 0.0
    %2137 = vmatprep.subr.mxu0 0.0
    %2138 = vmatpush1.xpose.msra.mxu0 0.0
    %2139 = vmatprep.subr.mxu0 0.0
    %2140 = vmatpush1.xpose.msra.mxu0 0.0
    %2141 = vmatprep.subr.mxu0 0.0
    %2142 = vmatpush1.xpose.msra.mxu0 0.0
    %2143 = vmatprep.subr.mxu0 0.0
    %2144 = vmatpush1.xpose.msra.mxu0 0.0
    %2145 = vmatprep.subr.mxu0 0.0
    %2146 = vmatpush1.xpose.msra.mxu0 0.0
    %2147 = vmatprep.subr.mxu0 0.0
    %2148 = vmatpush1.xpose.msra.mxu0 0.0
    %2149 = vmatprep.subr.mxu0 0.0
    %2150 = vmatpush1.xpose.msra.mxu0 0.0
    %2151 = vmatprep.subr.mxu0 0.0
    %2152 = vmatpush1.xpose.msra.mxu0 0.0
    %2153 = vmatprep.subr.mxu0 0.0
    %2154 = vmatpush1.xpose.msra.mxu0 0.0
    %2155 = vmatprep.subr.mxu0 0.0
    %2156 = vmatpush1.xpose.msra.mxu0 0.0
    %2157 = vmatprep.subr.mxu0 0.0
    %2158 = vmatpush1.xpose.msra.mxu0 0.0
    %2159 = vmatprep.subr.mxu0 0.0
    %2160 = vmatpush1.xpose.msra.mxu0 0.0
    %2161 = vmatprep.subr.mxu0 0.0
    %2162 = vmatpush1.xpose.msra.mxu0 0.0
    %2163 = vmatprep.mubr.f32.mxu0 0.0
    %2164 = vmatmul.mubr.f32.gmra.mrb[0].mxu0 %v2094
    %v2165 = vpop.f32.mrb[0].mxu0
    %v2166 = vadd.f32 0.0, %v2165
    %v2167 = vpop.f32.mrb[0].mxu0
    %2168 = vdwg.mxu0
    %v2170 = vsel %vm505, %v2089, 0
    %2172 = vmatprep.subr.mxu0 0.0
    %2173 = vmatpush1.xpose.msra.mxu0 %v2097
    %2174 = vmatprep.subr.mxu0 0.0
    %2175 = vmatpush1.xpose.msra.mxu0 0.0
    %2176 = vmatprep.subr.mxu0 0.0
    %2177 = vmatpush1.xpose.msra.mxu0 0.0
    %2178 = vmatprep.subr.mxu0 0.0
    %2179 = vmatpush1.xpose.msra.mxu0 0.0
    %2180 = vmatprep.subr.mxu0 0.0
    %2181 = vmatpush1.xpose.msra.mxu0 0.0
    %2182 = vmatprep.subr.mxu0 0.0
    %2183 = vmatpush1.xpose.msra.mxu0 0.0
    %2184 = vmatprep.subr.mxu0 0.0
    %2185 = vmatpush1.xpose.msra.mxu0 0.0
    %2186 = vmatprep.subr.mxu0 0.0
    %2187 = vmatpush1.xpose.msra.mxu0 0.0
    %2188 = vmatprep.subr.mxu0 0.0
    %2189 = vmatpush1.xpose.msra.mxu0 0.0
    %2190 = vmatprep.subr.mxu0 0.0
    %2191 = vmatpush1.xpose.msra.mxu0 0.0
    %2192 = vmatprep.subr.mxu0 0.0
    %2193 = vmatpush1.xpose.msra.mxu0 0.0
    %2194 = vmatprep.subr.mxu0 0.0
    %2195 = vmatpush1.xpose.msra.mxu0 0.0
    %2196 = vmatprep.subr.mxu0 0.0
    %2197 = vmatpush1.xpose.msra.mxu0 0.0
    %2198 = vmatprep.subr.mxu0 0.0
    %2199 = vmatpush1.xpose.msra.mxu0 0.0
    %2200 = vmatprep.subr.mxu0 0.0
    %2201 = vmatpush1.xpose.msra.mxu0 0.0
    %2202 = vmatprep.subr.mxu0 0.0
    %2203 = vmatpush1.xpose.msra.mxu0 0.0
    %2204 = vmatprep.subr.mxu0 0.0
    %2205 = vmatpush1.xpose.msra.mxu0 0.0
    %2206 = vmatprep.subr.mxu0 0.0
    %2207 = vmatpush1.xpose.msra.mxu0 0.0
    %2208 = vmatprep.subr.mxu0 0.0
    %2209 = vmatpush1.xpose.msra.mxu0 0.0
    %2210 = vmatprep.subr.mxu0 0.0
    %2211 = vmatpush1.xpose.msra.mxu0 0.0
    %2212 = vmatprep.subr.mxu0 0.0
    %2213 = vmatpush1.xpose.msra.mxu0 0.0
    %2214 = vmatprep.subr.mxu0 0.0
    %2215 = vmatpush1.xpose.msra.mxu0 0.0
    %2216 = vmatprep.subr.mxu0 0.0
    %2217 = vmatpush1.xpose.msra.mxu0 0.0
    %2218 = vmatprep.subr.mxu0 0.0
    %2219 = vmatpush1.xpose.msra.mxu0 0.0
    %2220 = vmatprep.subr.mxu0 0.0
    %2221 = vmatpush1.xpose.msra.mxu0 0.0
    %2222 = vmatprep.subr.mxu0 0.0
    %2223 = vmatpush1.xpose.msra.mxu0 0.0
    %2224 = vmatprep.subr.mxu0 0.0
    %2225 = vmatpush1.xpose.msra.mxu0 0.0
    %2226 = vmatprep.subr.mxu0 0.0
    %2227 = vmatpush1.xpose.msra.mxu0 0.0
    %2228 = vmatprep.subr.mxu0 0.0
    %2229 = vmatpush1.xpose.msra.mxu0 0.0
    %2230 = vmatprep.subr.mxu0 0.0
    %2231 = vmatpush1.xpose.msra.mxu0 0.0
    %2232 = vmatprep.subr.mxu0 0.0
    %2233 = vmatpush1.xpose.msra.mxu0 0.0
    %2234 = vmatprep.subr.mxu0 0.0
    %2235 = vmatpush1.xpose.msra.mxu0 0.0
    %2236 = vmatprep.mubr.f32.mxu0 0.0
    %2237 = vmatmul.mubr.f32.gmra.mrb[0].mxu0 %v2170
    %v2238 = vpop.f32.mrb[0].mxu0
    %v2239 = vadd.f32 0.0, %v2238
    %v2240 = vpop.f32.mrb[0].mxu0
    %2241 = vdwg.mxu0
    %v2242 = vadd.f32 %v1872, %v2166
    %v2243 = vadd.f32 %v1945, %v2239
    %v2244 = vld [vmem:[%s3 + $0x11] sm:$0x1]
    %v2245 = vlaneseq
    %v2246 = vshrl.u32 %v2245, 7
    %v2247 = vsub.s32 0, %v2246
    %v2248 = vrot.slane %v2244, %v2247
    %v2249 = vadd.f32 %v2242, %v2248
    %v2250 = vadd.f32 %v2243, %v2248
    %vm2251 = vcmask 64512
    %v2252 = vsel %vm2251, %v2249, -inf
    %2253 = vmax.xlane.f32.xlu0 %v2252
    %v2254 = vpop.xlane.xlu0 %2253
    %v2255 = vsel %vm2251, %v2250, -inf
    %2256 = vmax.xlane.f32.xlu0 %v2255
    %v2257 = vpop.xlane.xlu0 %2256
    %v2258 = vsub.f32 %v2249, %v2254
    %v2259 = vsub.f32 %v2250, %v2257
    %v2260 = vmul.f32 %v2258, 1.442695
    %v2261 = vpow.pop %v2260
    %v2262 = vmul.f32 %v2259, 1.442695
    %v2263 = vpow.pop %v2262
    %v2264 = vsel %vm2251, %v2261, 0.0
    %2265 = vadd.xlane.f32.xlu0 %v2264
    %v2266 = vpop.xlane.xlu0 %2265
    %v2267 = vsel %vm2251, %v2263, 0.0
    %2268 = vadd.xlane.f32.xlu0 %v2267
    %v2269 = vpop.xlane.xlu0 %2268
    %v2270 = vlog2.pop %v2266
    %v2271 = vmul.f32 %v2270, 0.6931472
    %v2272 = vlog2.pop %v2269
    %v2273 = vmul.f32 %v2272, 0.6931472
    %v2274 = vadd.f32 %v2271, %v2254
    %v2275 = vadd.f32 %v2273, %v2257
    %v2276 = vsub.f32 %v2249, %v2274
    %v2277 = vsub.f32 %v2250, %v2275
    %v2278 = vsel %vm2251, %v2276, -inf
    %v2279 = vrot.slane %v2278, 4
    %v2280 = vmax.f32 %v2278, %v2279
    %v2281 = vrot.slane %v2280, 2
    %v2282 = vmax.f32 %v2280, %v2281
    %v2283 = vrot.slane %v2282, 1
    %v2284 = vmax.f32 %v2282, %v2283
    %v2285 = vsel %vm2251, %v2277, -inf
    %v2286 = vrot.slane %v2285, 4
    %v2287 = vmax.f32 %v2285, %v2286
    %v2288 = vrot.slane %v2287, 2
    %v2289 = vmax.f32 %v2287, %v2288
    %v2290 = vrot.slane %v2289, 1
    %v2291 = vmax.f32 %v2289, %v2290
    %v2294 = vsel %vm826, %v2291, %v2284
    %vm2296 = vcmask 58368
    %2297 = vst.msk [vmem:[#allocation2] sm:$0x3] %vm2296, %v2294
    // Predicated region
    $region18: #{pcnn_att_forward.1} parent=1 // pred_check
      _
    $region19: #{pcnn_att_forward.1} parent=1 // pred_check_branch
      %2299 = sbr.rel (0) target = $region21
    $region20: #{pcnn_att_forward.1} parent=1 // pred_region
      %s2301 = ssub.s32 32, 32
      %2302 = vsyncadd [#allocation3], %s2301
      %s2304 = sshll.u32 [#allocation2], 4
      %s2305 = int_to_ptr.vmem [resolvable:$true] %s2304
      %2307 = dma.vmem_to_hbm [thread:$0]  %s2305, 32, %s4, [#allocation3]
    $region21: #{pcnn_att_forward.1} parent=1 // pred_fallthru
      _
    // Predicated region
    $region22: #{pcnn_att_forward.1} parent=1 // pred_check
      _
    $region23: #{pcnn_att_forward.1} parent=1 // pred_check_branch
      %2309 = sbr.rel (0) target = $region25
    $region24: #{pcnn_att_forward.1} parent=1 // pred_region
      %2310 = dma.done [#allocation3], 32
    $region25: #{pcnn_att_forward.1} parent=1 // pred_fallthru
      _
    %2311 = vsyncpa [#allocation3], 1

</llo_original>
